<compile_context>
chip_gen: v7x
topology: tpu7x:2x2x1
jax: 0.10.0
libtpu: 0.0.40
codegen_flags: <defaults>
</compile_context>

<pallas_src>
import numpy as np
import jax
import jax.numpy as jnp
from jax.experimental import pallas as pl
from jax.experimental.pallas import tpu as pltpu

L = 17
BN_EPS = 1e-5


# ------------------------------------------------------------------ kernel ----
def count_classifier_kernel(
    x_ref,                      # (TB, 34)   bf16
    w1_ref, b1_ref,             # (34, 272)  bf16 / (1, 272) f32   conv1 as dense band
    w2_ref, b2_ref,             # (272, 544) bf16 / (1, 544) f32   conv2 as dense band
    w3_ref, b3_ref,             # (544, 272) bf16 / (1, 272) f32   fc1 (BN folded in)
    w4_ref, b4_ref,             # (272, 136) bf16 / (1, 136) f32   fc2
    w5_ref, b5_ref,             # (136, 68)  bf16 / (1, 68)  f32   fc3
    w6_ref, b6_ref,             # (68, 3)    bf16 / (1, 3)   f32   fc4
    out_ref,                    # (TB, 3)    f32
):
    def dense(h_bf16, w_ref_, b_ref_):
        # bf16 MXU matmul, f32 accumulation + f32 bias.
        return jnp.dot(h_bf16, w_ref_[...],
                       preferred_element_type=jnp.float32) + b_ref_[...]

    def dense_relu(h_bf16, w_ref_, b_ref_):
        return jnp.maximum(dense(h_bf16, w_ref_, b_ref_), 0.0).astype(jnp.bfloat16)

    h = x_ref[...]                                    # (TB, 34) bf16
    h = dense_relu(h, w1_ref, b1_ref)                 # conv1 + relu        -> (TB, 272)
    h = dense_relu(h, w2_ref, b2_ref)                 # conv2 + relu        -> (TB, 544)
    h = dense_relu(h, w3_ref, b3_ref)                 # (BN∘fc1) + relu     -> (TB, 272)
    h = dense_relu(h, w4_ref, b4_ref)                 # fc2 + relu          -> (TB, 136)
    h = dense_relu(h, w5_ref, b5_ref)                 # fc3 + relu          -> (TB, 68)
    z = dense(h, w6_ref, b6_ref)                      # fc4 logits (f32)    -> (TB, 3)

    zs = z - jnp.max(z, axis=1, keepdims=True)        # log_softmax(dim=1), f32
    out_ref[...] = zs - jnp.log(jnp.sum(jnp.exp(zs), axis=1, keepdims=True))


# ------------------------------------------------------- wrapper-side packing ----
def _conv_shift_tensor(length, k):
    """S[k, m, l] = 1 iff input position m feeds output position l at tap k ('same' pad)."""
    pad = (k - 1) // 2
    s = np.zeros((k, length, length), np.float32)
    for kk in range(k):
        for l in range(length):
            m = l + kk - pad
            if 0 <= m < length:
                s[kk, m, l] = 1.0
    return s


def _conv1d_to_dense(w_ock, length):
    """Torch Conv1d weight (Cout, Cin, K), 'same' zero padding -> dense (Cin*L, Cout*L).
    Rows index the channel-major input (c*L + m); cols index the output (o*L + l)."""
    cout, cin, k = w_ock.shape
    s = jnp.asarray(_conv_shift_tensor(length, k))
    m = jnp.einsum("ock,kml->cmol", w_ock.astype(jnp.float32), s)
    return m.reshape(cin * length, cout * length)


def pack_params(p):
    """Precompute the six (weight, bias) pairs consumed by the kernel (bf16 weights, f32 biases)."""
    # conv1: the kernel consumes the raw interleaved x (B, 34); x[:, 2m+c] == matrix_in[:, c, m],
    # so permute the channel-major rows (c*17 + m) of the dense band into interleaved order.
    m1 = _conv1d_to_dense(p["conv1_w"], L)                        # (34, 272)
    r = np.arange(2 * L)
    m1 = m1[(r % 2) * L + (r // 2)]                               # rows now in x-column order
    b1 = jnp.repeat(p["conv1_b"], L)                              # (272,)  [o*17 + l]

    m2 = _conv1d_to_dense(p["conv2_w"], L)                        # (272, 544)
    b2 = jnp.repeat(p["conv2_b"], L)                              # (544,)  [c*17 + l]

    # BatchNorm1d(32), inference: y = h*scale[c] + shift[c]; fold into fc1 (exact at eval,
    # only identity Dropout/Flatten sit between relu(conv2) and fc1).
    scale = p["bn_gamma"] * jax.lax.rsqrt(p["bn_var"] + BN_EPS)   # (32,)
    shift = p["bn_beta"] - p["bn_mean"] * scale
    scale_vec = jnp.repeat(scale, L)                              # (544,) torch flatten order c*17+l
    shift_vec = jnp.repeat(shift, L)
    w3 = p["fc1_w"].T * scale_vec[:, None]                        # (544, 272)
    b3 = p["fc1_b"] + p["fc1_w"] @ shift_vec                      # (272,)

    w4, b4 = p["fc2_w"].T, p["fc2_b"]
    w5, b5 = p["fc3_w"].T, p["fc3_b"]
    w6, b6 = p["fc4_w"].T, p["fc4_b"]

    bf = lambda a: a.astype(jnp.bfloat16)
    row = lambda v: v.reshape(1, -1).astype(jnp.float32)
    return (bf(m1), row(b1), bf(m2), row(b2), bf(w3), row(b3),
            bf(w4), row(b4), bf(w5), row(b5), bf(w6), row(b6))


def _round_up(n, m):
    return ((n + m - 1) // m) * m


def count_classifier_forward(x, p, *, tb_max=512):
    """Inference forward pass.  x: (B, >=34) float; returns (B, 3) f32 log-probs."""
    B = x.shape[0]
    weights = pack_params(p)

    # Batch tile: multiple of 16 (bf16 sublane packing), capped at tb_max; pad B up to a
    # whole number of tiles so every block is full (no partial-tile masking).
    TB = min(tb_max, _round_up(B, 16))
    B_pad = _round_up(B, TB)
    x_bf = x[:, :34].astype(jnp.bfloat16)
    if B_pad != B:
        x_bf = jnp.pad(x_bf, ((0, B_pad - B), (0, 0)))

    in_specs = [pl.BlockSpec((TB, 34), lambda i: (i, 0))]         # batch-tiled input
    for w in weights:                                             # weights resident in VMEM
        in_specs.append(pl.BlockSpec(w.shape, lambda i: (0, 0)))

    out = pl.pallas_call(
        count_classifier_kernel,
        out_shape=jax.ShapeDtypeStruct((B_pad, 3), jnp.float32),
        grid=(B_pad // TB,),
        in_specs=in_specs,
        out_specs=pl.BlockSpec((TB, 3), lambda i: (i, 0)),
        compiler_params=pltpu.CompilerParams(
            dimension_semantics=("parallel",),          # megacore sharding on v7x
            vmem_limit_bytes=32 * 1024 * 1024,          # explicit; fits v5e/v6e/v7x easily
        ),
    )(x_bf, *weights)
    return out[:B]


# --------------------------------------------------------------- parameters ----
def init_params(key):
    ks = jax.random.split(key, 12)

    def unif(k, shape, fan_in):
        b = 1.0 / jnp.sqrt(jnp.float32(fan_in))
        return jax.random.uniform(k, shape, jnp.float32, -b, b)

    p = {}
    p["conv1_w"] = unif(ks[0], (16, 2, 3), 2 * 3)     # torch Conv1d (out, in, k)
    p["conv1_b"] = unif(ks[1], (16,), 2 * 3)
    p["conv2_w"] = unif(ks[2], (32, 16, 3), 16 * 3)
    p["conv2_b"] = unif(ks[3], (32,), 16 * 3)
    p["fc1_w"] = unif(ks[4], (272, 544), 544)         # torch Linear (out, in)
    p["fc1_b"] = unif(ks[5], (272,), 544)
    p["fc2_w"] = unif(ks[6], (136, 272), 272)
    p["fc2_b"] = unif(ks[7], (136,), 272)
    p["fc3_w"] = unif(ks[8], (68, 136), 136)
    p["fc3_b"] = unif(ks[9], (68,), 136)
    p["fc4_w"] = unif(ks[10], (3, 68), 68)
    p["fc4_b"] = unif(ks[11], (3,), 68)
    # BatchNorm1d(32) parameters / running stats (deterministic, non-trivial)
    idx = jnp.arange(32, dtype=jnp.float32)
    p["bn_gamma"] = 1.0 + 0.1 * jnp.cos(idx)
    p["bn_beta"] = 0.05 * jnp.sin(idx)
    p["bn_mean"] = 0.02 * idx
    p["bn_var"] = 1.0 + 0.03 * idx
    return p


# ---------------------------------------------------------------- reference ----
def reference_forward(x, p):
    """Plain-JAX reference in the torch NCL layout, Precision.HIGHEST (independent check)."""
    B = x.shape[0]
    hi = jax.lax.Precision.HIGHEST
    xm = jnp.stack([x[:, 0:34:2], x[:, 1:34:2]], axis=1)          # (B, 2, 17)

    def conv1d_ncl(h, w, b):
        hp = jnp.pad(h, ((0, 0), (0, 0), (1, 1)))
        out = b[None, :, None]
        for k in range(3):
            out = out + jnp.einsum("oc,bcl->bol", w[:, :, k], hp[:, :, k:k + 17],
                                   precision=hi)
        return out

    h = jax.nn.relu(conv1d_ncl(xm, p["conv1_w"], p["conv1_b"]))
    h = jax.nn.relu(conv1d_ncl(h, p["conv2_w"], p["conv2_b"]))
    h = (h - p["bn_mean"][None, :, None]) / jnp.sqrt(p["bn_var"][None, :, None] + BN_EPS)
    h = h * p["bn_gamma"][None, :, None] + p["bn_beta"][None, :, None]
    h = h.reshape(B, 32 * 17)
    h = jax.nn.relu(jnp.dot(h, p["fc1_w"].T, precision=hi) + p["fc1_b"])
    h = jax.nn.relu(jnp.dot(h, p["fc2_w"].T, precision=hi) + p["fc2_b"])
    h = jax.nn.relu(jnp.dot(h, p["fc3_w"].T, precision=hi) + p["fc3_b"])
    h = jnp.dot(h, p["fc4_w"].T, precision=hi) + p["fc4_b"]
    return jax.nn.log_softmax(h, axis=1)


if __name__ == "__main__":
    key = jax.random.PRNGKey(0)
    pkey, xkey = jax.random.split(key)
    params = init_params(pkey)
    x = jax.random.normal(xkey, (2, 34), jnp.float32)

    out = count_classifier_forward(x, params)
    out = jax.block_until_ready(out)

    ref = reference_forward(x, params)
    # bf16 matmul operands vs f32-HIGHEST reference: allow bf16-level tolerance.
    if out.shape != (2, 3) or not bool(jnp.allclose(out, ref, rtol=2e-2, atol=2e-2)):
        raise RuntimeError(f"Pallas output does not match reference:\n{out}\n{ref}")
    print("KERNEL_OK")
</pallas_src>

<mosaic_0001>
module attributes {stable_mosaic.version = 11 : i64} {
  func.func @count_classifier_kernel(%arg0: i32, %arg1: memref<16x34xbf16, #tpu.memory_space<vmem>>, %arg2: memref<34x272xbf16, #tpu.memory_space<vmem>>, %arg3: memref<1x272xf32, #tpu.memory_space<vmem>>, %arg4: memref<272x544xbf16, #tpu.memory_space<vmem>>, %arg5: memref<1x544xf32, #tpu.memory_space<vmem>>, %arg6: memref<544x272xbf16, #tpu.memory_space<vmem>>, %arg7: memref<1x272xf32, #tpu.memory_space<vmem>>, %arg8: memref<272x136xbf16, #tpu.memory_space<vmem>>, %arg9: memref<1x136xf32, #tpu.memory_space<vmem>>, %arg10: memref<136x68xbf16, #tpu.memory_space<vmem>>, %arg11: memref<1x68xf32, #tpu.memory_space<vmem>>, %arg12: memref<68x3xbf16, #tpu.memory_space<vmem>>, %arg13: memref<1x3xf32, #tpu.memory_space<vmem>>, %arg14: memref<16x3xf32, #tpu.memory_space<vmem>>) attributes {dimension_semantics = [#tpu.dimension_semantics<parallel>], iteration_bounds = array<i64: 1>, scalar_prefetch = 0 : i64, scratch_operands = 0 : i64, tpu.core_type = #tpu.core_type<tc>, window_params = [{transform_indices = @transform_0, window_bounds = array<i64: 16, 34>}, {pipeline_mode = #tpu.pipeline_mode<synchronous>, transform_indices = @transform_1, window_bounds = array<i64: 34, 272>}, {pipeline_mode = #tpu.pipeline_mode<synchronous>, transform_indices = @transform_2, window_bounds = array<i64: 1, 272>}, {pipeline_mode = #tpu.pipeline_mode<synchronous>, transform_indices = @transform_3, window_bounds = array<i64: 272, 544>}, {pipeline_mode = #tpu.pipeline_mode<synchronous>, transform_indices = @transform_4, window_bounds = array<i64: 1, 544>}, {pipeline_mode = #tpu.pipeline_mode<synchronous>, transform_indices = @transform_5, window_bounds = array<i64: 544, 272>}, {pipeline_mode = #tpu.pipeline_mode<synchronous>, transform_indices = @transform_6, window_bounds = array<i64: 1, 272>}, {pipeline_mode = #tpu.pipeline_mode<synchronous>, transform_indices = @transform_7, window_bounds = array<i64: 272, 136>}, {pipeline_mode = #tpu.pipeline_mode<synchronous>, transform_indices = @transform_8, window_bounds = array<i64: 1, 136>}, {pipeline_mode = #tpu.pipeline_mode<synchronous>, transform_indices = @transform_9, window_bounds = array<i64: 136, 68>}, {pipeline_mode = #tpu.pipeline_mode<synchronous>, transform_indices = @transform_10, window_bounds = array<i64: 1, 68>}, {pipeline_mode = #tpu.pipeline_mode<synchronous>, transform_indices = @transform_11, window_bounds = array<i64: 68, 3>}, {pipeline_mode = #tpu.pipeline_mode<synchronous>, transform_indices = @transform_12, window_bounds = array<i64: 1, 3>}, {transform_indices = @transform_13, window_bounds = array<i64: 16, 3>}]} {
    %c0 = arith.constant 0 : index
    %c0_0 = arith.constant 0 : index
    %0 = vector.load %arg1[%c0, %c0_0] : memref<16x34xbf16, #tpu.memory_space<vmem>>, vector<16x34xbf16>
    %c0_1 = arith.constant 0 : index
    %c0_2 = arith.constant 0 : index
    %1 = vector.load %arg2[%c0_1, %c0_2] : memref<34x272xbf16, #tpu.memory_space<vmem>>, vector<34x272xbf16>
    %cst = arith.constant dense<0.000000e+00> : vector<16x272xf32>
    %2 = tpu.matmul %0, %1, %cst {dimension_numbers = #tpu.dot_dimension_numbers<[1], [0], [0], [1], [0, 0, 1, 1], [], []>} : vector<16x34xbf16>, vector<34x272xbf16>, vector<16x272xf32> -> vector<16x272xf32>
    %c0_3 = arith.constant 0 : index
    %c0_4 = arith.constant 0 : index
    %3 = vector.load %arg3[%c0_3, %c0_4] : memref<1x272xf32, #tpu.memory_space<vmem>>, vector<1x272xf32>
    %4 = vector.broadcast %3 : vector<1x272xf32> to vector<16x272xf32>
    %5 = arith.addf %2, %4 : vector<16x272xf32>
    %cst_5 = arith.constant 0.000000e+00 : f32
    %6 = vector.broadcast %cst_5 : f32 to vector<16x272xf32>
    %7 = arith.maximumf %5, %6 : vector<16x272xf32>
    %8 = arith.truncf %7 : vector<16x272xf32> to vector<16x272xbf16>
    %c0_6 = arith.constant 0 : index
    %c0_7 = arith.constant 0 : index
    %9 = vector.load %arg4[%c0_6, %c0_7] : memref<272x544xbf16, #tpu.memory_space<vmem>>, vector<272x544xbf16>
    %cst_8 = arith.constant dense<0.000000e+00> : vector<16x544xf32>
    %10 = tpu.matmul %8, %9, %cst_8 {dimension_numbers = #tpu.dot_dimension_numbers<[1], [0], [0], [1], [0, 0, 1, 1], [], []>} : vector<16x272xbf16>, vector<272x544xbf16>, vector<16x544xf32> -> vector<16x544xf32>
    %c0_9 = arith.constant 0 : index
    %c0_10 = arith.constant 0 : index
    %11 = vector.load %arg5[%c0_9, %c0_10] : memref<1x544xf32, #tpu.memory_space<vmem>>, vector<1x544xf32>
    %12 = vector.broadcast %11 : vector<1x544xf32> to vector<16x544xf32>
    %13 = arith.addf %10, %12 : vector<16x544xf32>
    %cst_11 = arith.constant 0.000000e+00 : f32
    %14 = vector.broadcast %cst_11 : f32 to vector<16x544xf32>
    %15 = arith.maximumf %13, %14 : vector<16x544xf32>
    %16 = arith.truncf %15 : vector<16x544xf32> to vector<16x544xbf16>
    %c0_12 = arith.constant 0 : index
    %c0_13 = arith.constant 0 : index
    %17 = vector.load %arg6[%c0_12, %c0_13] : memref<544x272xbf16, #tpu.memory_space<vmem>>, vector<544x272xbf16>
    %cst_14 = arith.constant dense<0.000000e+00> : vector<16x272xf32>
    %18 = tpu.matmul %16, %17, %cst_14 {dimension_numbers = #tpu.dot_dimension_numbers<[1], [0], [0], [1], [0, 0, 1, 1], [], []>} : vector<16x544xbf16>, vector<544x272xbf16>, vector<16x272xf32> -> vector<16x272xf32>
    %c0_15 = arith.constant 0 : index
    %c0_16 = arith.constant 0 : index
    %19 = vector.load %arg7[%c0_15, %c0_16] : memref<1x272xf32, #tpu.memory_space<vmem>>, vector<1x272xf32>
    %20 = vector.broadcast %19 : vector<1x272xf32> to vector<16x272xf32>
    %21 = arith.addf %18, %20 : vector<16x272xf32>
    %cst_17 = arith.constant 0.000000e+00 : f32
    %22 = vector.broadcast %cst_17 : f32 to vector<16x272xf32>
    %23 = arith.maximumf %21, %22 : vector<16x272xf32>
    %24 = arith.truncf %23 : vector<16x272xf32> to vector<16x272xbf16>
    %c0_18 = arith.constant 0 : index
    %c0_19 = arith.constant 0 : index
    %25 = vector.load %arg8[%c0_18, %c0_19] : memref<272x136xbf16, #tpu.memory_space<vmem>>, vector<272x136xbf16>
    %cst_20 = arith.constant dense<0.000000e+00> : vector<16x136xf32>
    %26 = tpu.matmul %24, %25, %cst_20 {dimension_numbers = #tpu.dot_dimension_numbers<[1], [0], [0], [1], [0, 0, 1, 1], [], []>} : vector<16x272xbf16>, vector<272x136xbf16>, vector<16x136xf32> -> vector<16x136xf32>
    %c0_21 = arith.constant 0 : index
    %c0_22 = arith.constant 0 : index
    %27 = vector.load %arg9[%c0_21, %c0_22] : memref<1x136xf32, #tpu.memory_space<vmem>>, vector<1x136xf32>
    %28 = vector.broadcast %27 : vector<1x136xf32> to vector<16x136xf32>
    %29 = arith.addf %26, %28 : vector<16x136xf32>
    %cst_23 = arith.constant 0.000000e+00 : f32
    %30 = vector.broadcast %cst_23 : f32 to vector<16x136xf32>
    %31 = arith.maximumf %29, %30 : vector<16x136xf32>
    %32 = arith.truncf %31 : vector<16x136xf32> to vector<16x136xbf16>
    %c0_24 = arith.constant 0 : index
    %c0_25 = arith.constant 0 : index
    %33 = vector.load %arg10[%c0_24, %c0_25] : memref<136x68xbf16, #tpu.memory_space<vmem>>, vector<136x68xbf16>
    %cst_26 = arith.constant dense<0.000000e+00> : vector<16x68xf32>
    %34 = tpu.matmul %32, %33, %cst_26 {dimension_numbers = #tpu.dot_dimension_numbers<[1], [0], [0], [1], [0, 0, 1, 1], [], []>} : vector<16x136xbf16>, vector<136x68xbf16>, vector<16x68xf32> -> vector<16x68xf32>
    %c0_27 = arith.constant 0 : index
    %c0_28 = arith.constant 0 : index
    %35 = vector.load %arg11[%c0_27, %c0_28] : memref<1x68xf32, #tpu.memory_space<vmem>>, vector<1x68xf32>
    %36 = vector.broadcast %35 : vector<1x68xf32> to vector<16x68xf32>
    %37 = arith.addf %34, %36 : vector<16x68xf32>
    %cst_29 = arith.constant 0.000000e+00 : f32
    %38 = vector.broadcast %cst_29 : f32 to vector<16x68xf32>
    %39 = arith.maximumf %37, %38 : vector<16x68xf32>
    %40 = arith.truncf %39 : vector<16x68xf32> to vector<16x68xbf16>
    %c0_30 = arith.constant 0 : index
    %c0_31 = arith.constant 0 : index
    %41 = vector.load %arg12[%c0_30, %c0_31] : memref<68x3xbf16, #tpu.memory_space<vmem>>, vector<68x3xbf16>
    %cst_32 = arith.constant dense<0.000000e+00> : vector<16x3xf32>
    %42 = tpu.matmul %40, %41, %cst_32 {dimension_numbers = #tpu.dot_dimension_numbers<[1], [0], [0], [1], [0, 0, 1, 1], [], []>} : vector<16x68xbf16>, vector<68x3xbf16>, vector<16x3xf32> -> vector<16x3xf32>
    %c0_33 = arith.constant 0 : index
    %c0_34 = arith.constant 0 : index
    %43 = vector.load %arg13[%c0_33, %c0_34] : memref<1x3xf32, #tpu.memory_space<vmem>>, vector<1x3xf32>
    %44 = vector.broadcast %43 : vector<1x3xf32> to vector<16x3xf32>
    %45 = arith.addf %42, %44 : vector<16x3xf32>
    %cst_35 = arith.constant dense<0xFF800000> : vector<16xf32>
    %46 = vector.multi_reduction <maximumf>, %45, %cst_35 [1] : vector<16x3xf32> to vector<16xf32>
    %47 = vector.shape_cast %46 : vector<16xf32> to vector<16x1xf32>
    %48 = vector.broadcast %47 : vector<16x1xf32> to vector<16x3xf32>
    %49 = arith.subf %45, %48 : vector<16x3xf32>
    %50 = math.exp %49 : vector<16x3xf32>
    %cst_36 = arith.constant dense<0.000000e+00> : vector<16xf32>
    %51 = vector.multi_reduction <add>, %50, %cst_36 [1] : vector<16x3xf32> to vector<16xf32>
    %52 = vector.shape_cast %51 : vector<16xf32> to vector<16x1xf32>
    %53 = math.log %52 : vector<16x1xf32>
    %54 = vector.broadcast %53 : vector<16x1xf32> to vector<16x3xf32>
    %55 = arith.subf %49, %54 : vector<16x3xf32>
    %c0_37 = arith.constant 0 : index
    %c0_38 = arith.constant 0 : index
    %56 = vector.load %arg14[%c0_37, %c0_38] : memref<16x3xf32, #tpu.memory_space<vmem>>, vector<16x3xf32>
    tpu.vector_store %arg14[%c0_37, %c0_38], %55 {strides = array<i32>} : memref<16x3xf32, #tpu.memory_space<vmem>>, vector<16x3xf32>,
    return
  }
  func.func @transform_0(%arg0: i32) -> (i32, i32) {
    %c0_i32 = arith.constant 0 : i32
    %c0_i32_0 = arith.constant 0 : i32
    return %arg0, %c0_i32 : i32, i32
  }
  func.func @transform_1(%arg0: i32) -> (i32, i32) {
    %c0_i32 = arith.constant 0 : i32
    %c0_i32_0 = arith.constant 0 : i32
    %c0_i32_1 = arith.constant 0 : i32
    return %c0_i32, %c0_i32_0 : i32, i32
  }
  func.func @transform_2(%arg0: i32) -> (i32, i32) {
    %c0_i32 = arith.constant 0 : i32
    %c0_i32_0 = arith.constant 0 : i32
    %c0_i32_1 = arith.constant 0 : i32
    return %c0_i32, %c0_i32_0 : i32, i32
  }
  func.func @transform_3(%arg0: i32) -> (i32, i32) {
    %c0_i32 = arith.constant 0 : i32
    %c0_i32_0 = arith.constant 0 : i32
    %c0_i32_1 = arith.constant 0 : i32
    return %c0_i32, %c0_i32_0 : i32, i32
  }
  func.func @transform_4(%arg0: i32) -> (i32, i32) {
    %c0_i32 = arith.constant 0 : i32
    %c0_i32_0 = arith.constant 0 : i32
    %c0_i32_1 = arith.constant 0 : i32
    return %c0_i32, %c0_i32_0 : i32, i32
  }
  func.func @transform_5(%arg0: i32) -> (i32, i32) {
    %c0_i32 = arith.constant 0 : i32
    %c0_i32_0 = arith.constant 0 : i32
    %c0_i32_1 = arith.constant 0 : i32
    return %c0_i32, %c0_i32_0 : i32, i32
  }
  func.func @transform_6(%arg0: i32) -> (i32, i32) {
    %c0_i32 = arith.constant 0 : i32
    %c0_i32_0 = arith.constant 0 : i32
    %c0_i32_1 = arith.constant 0 : i32
    return %c0_i32, %c0_i32_0 : i32, i32
  }
  func.func @transform_7(%arg0: i32) -> (i32, i32) {
    %c0_i32 = arith.constant 0 : i32
    %c0_i32_0 = arith.constant 0 : i32
    %c0_i32_1 = arith.constant 0 : i32
    return %c0_i32, %c0_i32_0 : i32, i32
  }
  func.func @transform_8(%arg0: i32) -> (i32, i32) {
    %c0_i32 = arith.constant 0 : i32
    %c0_i32_0 = arith.constant 0 : i32
    %c0_i32_1 = arith.constant 0 : i32
    return %c0_i32, %c0_i32_0 : i32, i32
  }
  func.func @transform_9(%arg0: i32) -> (i32, i32) {
    %c0_i32 = arith.constant 0 : i32
    %c0_i32_0 = arith.constant 0 : i32
    %c0_i32_1 = arith.constant 0 : i32
    return %c0_i32, %c0_i32_0 : i32, i32
  }
  func.func @transform_10(%arg0: i32) -> (i32, i32) {
    %c0_i32 = arith.constant 0 : i32
    %c0_i32_0 = arith.constant 0 : i32
    %c0_i32_1 = arith.constant 0 : i32
    return %c0_i32, %c0_i32_0 : i32, i32
  }
  func.func @transform_11(%arg0: i32) -> (i32, i32) {
    %c0_i32 = arith.constant 0 : i32
    %c0_i32_0 = arith.constant 0 : i32
    %c0_i32_1 = arith.constant 0 : i32
    return %c0_i32, %c0_i32_0 : i32, i32
  }
  func.func @transform_12(%arg0: i32) -> (i32, i32) {
    %c0_i32 = arith.constant 0 : i32
    %c0_i32_0 = arith.constant 0 : i32
    %c0_i32_1 = arith.constant 0 : i32
    return %c0_i32, %c0_i32_0 : i32, i32
  }
  func.func @transform_13(%arg0: i32) -> (i32, i32) {
    %c0_i32 = arith.constant 0 : i32
    %c0_i32_0 = arith.constant 0 : i32
    return %arg0, %c0_i32 : i32, i32
  }
}

</mosaic_0001>

<llo_original>
// kernel: tpu_custom_call.1
$region0: #{tpu_custom_call.1}
  #allocation0 [shape = 'u32[]', space=smem, size = 0x4, offset = 0x4, fixed_abs, tag = 'smem constant byte address 0x4 - core index']
  #allocation1 [shape = 'u32[144,128]{1,0:T(1,128)}', space=vmem, size = 0x12000, scoped, tag = 'internal scratch']
  %s0 = inlined_call_operand.vmem [shape: bf16[16,34], index: 0, kind: input, shape index: {}]
  %s1 = inlined_call_operand.vmem [shape: bf16[34,272], index: 1, kind: input, shape index: {}]
  %s2 = inlined_call_operand.vmem [shape: f32[1,272], index: 2, kind: input, shape index: {}]
  %s3 = inlined_call_operand.vmem [shape: bf16[272,544], index: 3, kind: input, shape index: {}]
  %s4 = inlined_call_operand.vmem [shape: f32[1,544], index: 4, kind: input, shape index: {}]
  %s5 = inlined_call_operand.vmem [shape: bf16[544,272], index: 5, kind: input, shape index: {}]
  %s6 = inlined_call_operand.vmem [shape: f32[1,272], index: 6, kind: input, shape index: {}]
  %s7 = inlined_call_operand.vmem [shape: bf16[272,136], index: 7, kind: input, shape index: {}]
  %s8 = inlined_call_operand.vmem [shape: f32[1,136], index: 8, kind: input, shape index: {}]
  %s9 = inlined_call_operand.vmem [shape: bf16[136,68], index: 9, kind: input, shape index: {}]
  %s10 = inlined_call_operand.vmem [shape: f32[1,68], index: 10, kind: input, shape index: {}]
  %s11 = inlined_call_operand.vmem [shape: bf16[68,3], index: 11, kind: input, shape index: {}]
  %s12 = inlined_call_operand.vmem [shape: f32[1,3], index: 12, kind: input, shape index: {}]
  %s13 = inlined_call_operand.vmem [shape: f32[16,3], index: 13, kind: output, shape index: {}]
  %s14 = sld [smem:[#allocation0]]
  $region62: #{tpu_custom_call.1} parent=0
    _
  %s16 = ssub.s32 1, %s14
  %s17 = scalar_select 0, %s16, %s14
  // Predicated region
  $region2: #{tpu_custom_call.1} parent=0 // pred_check
    _
  $region3: #{tpu_custom_call.1} parent=0 // pred_check_branch
    %19 = sbr.rel (0) target = $region5
  $region4: #{tpu_custom_call.1} parent=0 // pred_region
    _
  $region5: #{tpu_custom_call.1} parent=0 // pred_fallthru
    _
  // Predicated region
  $region6: #{tpu_custom_call.1} parent=0 // pred_check
    _
  $region7: #{tpu_custom_call.1} parent=0 // pred_check_branch
    %21 = sbr.rel (0) target = $region9
  $region8: #{tpu_custom_call.1} parent=0 // pred_region
    _
  $region9: #{tpu_custom_call.1} parent=0 // pred_fallthru
    _
  // Predicated region
  $region10: #{tpu_custom_call.1} parent=0 // pred_check
    _
  $region11: #{tpu_custom_call.1} parent=0 // pred_check_branch
    %23 = sbr.rel (0) target = $region13
  $region12: #{tpu_custom_call.1} parent=0 // pred_region
    _
  $region13: #{tpu_custom_call.1} parent=0 // pred_fallthru
    _
  // Predicated region
  $region14: #{tpu_custom_call.1} parent=0 // pred_check
    _
  $region15: #{tpu_custom_call.1} parent=0 // pred_check_branch
    %25 = sbr.rel (0) target = $region17
  $region16: #{tpu_custom_call.1} parent=0 // pred_region
    _
  $region17: #{tpu_custom_call.1} parent=0 // pred_fallthru
    _
  // Predicated region
  $region18: #{tpu_custom_call.1} parent=0 // pred_check
    _
  $region19: #{tpu_custom_call.1} parent=0 // pred_check_branch
    %27 = sbr.rel (0) target = $region21
  $region20: #{tpu_custom_call.1} parent=0 // pred_region
    _
  $region21: #{tpu_custom_call.1} parent=0 // pred_fallthru
    _
  // Predicated region
  $region22: #{tpu_custom_call.1} parent=0 // pred_check
    _
  $region23: #{tpu_custom_call.1} parent=0 // pred_check_branch
    %29 = sbr.rel (0) target = $region25
  $region24: #{tpu_custom_call.1} parent=0 // pred_region
    _
  $region25: #{tpu_custom_call.1} parent=0 // pred_fallthru
    _
  // Predicated region
  $region26: #{tpu_custom_call.1} parent=0 // pred_check
    _
  $region27: #{tpu_custom_call.1} parent=0 // pred_check_branch
    %31 = sbr.rel (0) target = $region29
  $region28: #{tpu_custom_call.1} parent=0 // pred_region
    _
  $region29: #{tpu_custom_call.1} parent=0 // pred_fallthru
    _
  // Predicated region
  $region30: #{tpu_custom_call.1} parent=0 // pred_check
    _
  $region31: #{tpu_custom_call.1} parent=0 // pred_check_branch
    %33 = sbr.rel (0) target = $region33
  $region32: #{tpu_custom_call.1} parent=0 // pred_region
    _
  $region33: #{tpu_custom_call.1} parent=0 // pred_fallthru
    _
  // Predicated region
  $region34: #{tpu_custom_call.1} parent=0 // pred_check
    _
  $region35: #{tpu_custom_call.1} parent=0 // pred_check_branch
    %35 = sbr.rel (0) target = $region37
  $region36: #{tpu_custom_call.1} parent=0 // pred_region
    _
  $region37: #{tpu_custom_call.1} parent=0 // pred_fallthru
    _
  // Predicated region
  $region38: #{tpu_custom_call.1} parent=0 // pred_check
    _
  $region39: #{tpu_custom_call.1} parent=0 // pred_check_branch
    %37 = sbr.rel (0) target = $region41
  $region40: #{tpu_custom_call.1} parent=0 // pred_region
    _
  $region41: #{tpu_custom_call.1} parent=0 // pred_fallthru
    _
  // Predicated region
  $region42: #{tpu_custom_call.1} parent=0 // pred_check
    _
  $region43: #{tpu_custom_call.1} parent=0 // pred_check_branch
    %39 = sbr.rel (0) target = $region45
  $region44: #{tpu_custom_call.1} parent=0 // pred_region
    _
  $region45: #{tpu_custom_call.1} parent=0 // pred_fallthru
    _
  // Predicated region
  $region46: #{tpu_custom_call.1} parent=0 // pred_check
    _
  $region47: #{tpu_custom_call.1} parent=0 // pred_check_branch
    %41 = sbr.rel (0) target = $region49
  $region48: #{tpu_custom_call.1} parent=0 // pred_region
    _
  $region49: #{tpu_custom_call.1} parent=0 // pred_fallthru
    _
  // Predicated region
  $region50: #{tpu_custom_call.1} parent=0 // pred_check
    _
  $region51: #{tpu_custom_call.1} parent=0 // pred_check_branch
    %43 = sbr.rel (0) target = $region53
  $region52: #{tpu_custom_call.1} parent=0 // pred_region
    _
  $region53: #{tpu_custom_call.1} parent=0 // pred_fallthru
    _
  %v45 = vld [vmem:[%s0] sm:$0xf]
  %v46 = vld [vmem:[%s0 + $0x4] sm:$0xf]
  %v47 = vld [vmem:[%s1] sm:$0xff]
  %v48 = vld [vmem:[%s1 + $0x8] sm:$0xf]
  %v49 = vld [vmem:[%s1 + $0xc] sm:$0xff]
  %v50 = vld [vmem:[%s1 + $0x14] sm:$0xf]
  %v51 = vld [vmem:[%s1 + $0x18] sm:$0xff]
  %v52 = vld [vmem:[%s1 + $0x20] sm:$0xf]
  %v53 = vld [vmem:[%s1 + $0x24] sm:$0xff]
  %v54 = vld [vmem:[%s1 + $0x2c] sm:$0xf]
  %v55 = vld [vmem:[%s1 + $0x30] sm:$0x11]
  %v56 = vld [vmem:[%s1 + $0x38] sm:$0x1]
  %v57 = vld [vmem:[%s2] sm:$0x7]
  %v59 = vlaneseq
  %v60 = vshrl.u32 %v59, 7
  %v61 = vsub.s32 0, %v60
  %v62 = vrot.slane %v57, %v61
  %v63 = vlaneseq
  %v64 = vshrl.u32 %v63, 7
  %v65 = vsub.s32 1, %v64
  %v66 = vrot.slane %v57, %v65
  %v67 = vlaneseq
  %v68 = vshrl.u32 %v67, 7
  %v69 = vsub.s32 2, %v68
  %v70 = vrot.slane %v57, %v69
  %v76 = vunpack.c.l.b16 %v45
  %v77 = vunpack.c.l.b16 %v46
  %v78 = vpack.c.b16 %v77, %v76
  %v89 = vunpack.c.l.b16 %v47
  %v90 = vunpack.c.h.b16 %v47
  %v91 = vunpack.c.l.b16 %v48
  %v92 = vunpack.c.l.b16 %v49
  %v93 = vunpack.c.h.b16 %v49
  %v94 = vunpack.c.l.b16 %v50
  %v95 = vunpack.c.l.b16 %v51
  %v96 = vunpack.c.h.b16 %v51
  %v97 = vunpack.c.l.b16 %v52
  %v98 = vunpack.c.l.b16 %v53
  %v99 = vunpack.c.h.b16 %v53
  %v100 = vunpack.c.l.b16 %v54
  %v101 = vunpack.c.l.b16 %v55
  %v102 = vunpack.c.h.b16 %v55
  %v103 = vunpack.c.l.b16 %v56
  %v104 = vpack.c.b16 %v92, %v89
  %v105 = vpack.c.b16 %v93, %v90
  %v106 = vpack.c.b16 %v94, %v91
  %v107 = vpack.c.b16 %v98, %v95
  %v108 = vpack.c.b16 %v99, %v96
  %v109 = vpack.c.b16 %v100, %v97
  %v110 = vpack.c.b16 %v101, %v101
  %v111 = vpack.c.b16 %v102, %v102
  %v112 = vpack.c.b16 %v103, %v103
  %vm119 = vcmask 277504
  %v121 = vsel %vm119, %v78, 0
  %vm123 = vcmask 1040384
  %v125 = vsel %vm123, %v110, 0
  %v128 = vsel %vm123, %v111, 0
  %v131 = vsel %vm123, %v112, 0
  %133 = vmatprep.subr.bf16.mxu0 %v105
  %134 = vmatpush1.bf16.msra.mxu0 %v104
  %135 = vmatprep.subr.bf16.mxu0 %v108
  %136 = vmatpush1.bf16.msra.mxu0 %v107
  %137 = vmatprep.subr.bf16.mxu0 %v128
  %138 = vmatpush1.bf16.msra.mxu0 %v125
  %139 = vmatprep.subr.bf16.mxu0 0
  %140 = vmatpush1.bf16.msra.mxu0 0
  %141 = vmatprep.subr.bf16.mxu0 0
  %142 = vmatpush1.bf16.msra.mxu0 0
  %143 = vmatprep.subr.bf16.mxu0 0
  %144 = vmatpush1.bf16.msra.mxu0 0
  %145 = vmatprep.subr.bf16.mxu0 0
  %146 = vmatpush1.bf16.msra.mxu0 0
  %147 = vmatprep.subr.bf16.mxu0 0
  %148 = vmatpush1.bf16.msra.mxu0 0
  %149 = vmatprep.subr.bf16.mxu0 0
  %150 = vmatpush1.bf16.msra.mxu0 0
  %151 = vmatprep.subr.bf16.mxu0 0
  %152 = vmatpush1.bf16.msra.mxu0 0
  %153 = vmatprep.subr.bf16.mxu0 0
  %154 = vmatpush1.bf16.msra.mxu0 0
  %155 = vmatprep.subr.bf16.mxu0 0
  %156 = vmatpush1.bf16.msra.mxu0 0
  %157 = vmatprep.subr.bf16.mxu0 0
  %158 = vmatpush1.bf16.msra.mxu0 0
  %159 = vmatprep.subr.bf16.mxu0 0
  %160 = vmatpush1.bf16.msra.mxu0 0
  %161 = vmatprep.subr.bf16.mxu0 0
  %162 = vmatpush1.bf16.msra.mxu0 0
  %163 = vmatprep.subr.bf16.mxu0 0
  %164 = vmatpush1.bf16.msra.mxu0 0
  %165 = vmatprep.mubr.bf16.mxu0 0
  %166 = vmatmul.mubr.bf16.gmra.mrb[0].mxu0 %v121
  %v167 = vpop.f32.mrb[0].mxu0
  %v168 = vadd.f32 %v62, %v167
  %v169 = vpop.f32.mrb[0].mxu0
  %v170 = vadd.f32 %v66, %v169
  %v171 = vpop.f32.mrb[0].mxu0
  %v172 = vadd.f32 %v62, %v171
  %v173 = vpop.f32.mrb[0].mxu0
  %v174 = vadd.f32 %v66, %v173
  %175 = vdwg.mxu0
  %176 = vmatprep.subr.bf16.mxu0 0
  %177 = vmatpush1.bf16.msra.mxu0 %v106
  %178 = vmatprep.subr.bf16.mxu0 0
  %179 = vmatpush1.bf16.msra.mxu0 %v109
  %180 = vmatprep.subr.bf16.mxu0 0
  %181 = vmatpush1.bf16.msra.mxu0 %v131
  %182 = vmatprep.subr.bf16.mxu0 0
  %183 = vmatpush1.bf16.msra.mxu0 0
  %184 = vmatprep.subr.bf16.mxu0 0
  %185 = vmatpush1.bf16.msra.mxu0 0
  %186 = vmatprep.subr.bf16.mxu0 0
  %187 = vmatpush1.bf16.msra.mxu0 0
  %188 = vmatprep.subr.bf16.mxu0 0
  %189 = vmatpush1.bf16.msra.mxu0 0
  %190 = vmatprep.subr.bf16.mxu0 0
  %191 = vmatpush1.bf16.msra.mxu0 0
  %192 = vmatprep.subr.bf16.mxu0 0
  %193 = vmatpush1.bf16.msra.mxu0 0
  %194 = vmatprep.subr.bf16.mxu0 0
  %195 = vmatpush1.bf16.msra.mxu0 0
  %196 = vmatprep.subr.bf16.mxu0 0
  %197 = vmatpush1.bf16.msra.mxu0 0
  %198 = vmatprep.subr.bf16.mxu0 0
  %199 = vmatpush1.bf16.msra.mxu0 0
  %200 = vmatprep.subr.bf16.mxu0 0
  %201 = vmatpush1.bf16.msra.mxu0 0
  %202 = vmatprep.subr.bf16.mxu0 0
  %203 = vmatpush1.bf16.msra.mxu0 0
  %204 = vmatprep.subr.bf16.mxu0 0
  %205 = vmatpush1.bf16.msra.mxu0 0
  %206 = vmatprep.subr.bf16.mxu0 0
  %207 = vmatpush1.bf16.msra.mxu0 0
  %208 = vmatprep.mubr.bf16.mxu0 0
  %209 = vmatmul.mubr.bf16.gmra.mrb[0].mxu0 %v121
  %v210 = vpop.f32.mrb[0].mxu0
  %v211 = vadd.f32 %v70, %v210
  %v212 = vpop.f32.mrb[0].mxu0
  %v213 = vpop.f32.mrb[0].mxu0
  %v214 = vadd.f32 %v70, %v213
  %v215 = vpop.f32.mrb[0].mxu0
  %216 = vdwg.mxu0
  %v217 = vmax.f32 %v168, 0.0
  %v218 = vmax.f32 %v170, 0.0
  %v219 = vmax.f32 %v211, 0.0
  %v220 = vmax.f32 %v172, 0.0
  %v221 = vmax.f32 %v174, 0.0
  %v222 = vmax.f32 %v214, 0.0
  %v223 = vpack.c.bf16 %v220, %v217
  %v224 = vpack.c.bf16 %v221, %v218
  %v225 = vpack.c.bf16 %v222, %v219
  %v226 = vld [vmem:[%s3] sm:$0xff]
  %v227 = vld [vmem:[%s3 + $0x8] sm:$0xff]
  %v228 = vld [vmem:[%s3 + $0x10] sm:$0xf]
  %v229 = vld [vmem:[%s3 + $0x14] sm:$0xff]
  %v230 = vld [vmem:[%s3 + $0x1c] sm:$0xff]
  %v231 = vld [vmem:[%s3 + $0x24] sm:$0xf]
  %v232 = vld [vmem:[%s3 + $0x28] sm:$0xff]
  %v233 = vld [vmem:[%s3 + $0x30] sm:$0xff]
  %v234 = vld [vmem:[%s3 + $0x38] sm:$0xf]
  %v235 = vld [vmem:[%s3 + $0x3c] sm:$0xff]
  %v236 = vld [vmem:[%s3 + $0x44] sm:$0xff]
  %v237 = vld [vmem:[%s3 + $0x4c] sm:$0xf]
  %v238 = vld [vmem:[%s3 + $0x50] sm:$0xff]
  %v239 = vld [vmem:[%s3 + $0x58] sm:$0xff]
  %v240 = vld [vmem:[%s3 + $0x60] sm:$0xf]
  %v241 = vld [vmem:[%s3 + $0x64] sm:$0xff]
  %v242 = vld [vmem:[%s3 + $0x6c] sm:$0xff]
  %v243 = vld [vmem:[%s3 + $0x74] sm:$0xf]
  %v244 = vld [vmem:[%s3 + $0x78] sm:$0xff]
  %v245 = vld [vmem:[%s3 + $0x80] sm:$0xff]
  %v246 = vld [vmem:[%s3 + $0x88] sm:$0xf]
  %v247 = vld [vmem:[%s3 + $0x8c] sm:$0xff]
  %v248 = vld [vmem:[%s3 + $0x94] sm:$0xff]
  %v249 = vld [vmem:[%s3 + $0x9c] sm:$0xf]
  %v250 = vld [vmem:[%s3 + $0xa0] sm:$0xff]
  %v251 = vld [vmem:[%s3 + $0xa8] sm:$0xff]
  %v252 = vld [vmem:[%s3 + $0xb0] sm:$0xf]
  %v253 = vld [vmem:[%s3 + $0xb4] sm:$0xff]
  %v254 = vld [vmem:[%s3 + $0xbc] sm:$0xff]
  %v255 = vld [vmem:[%s3 + $0xc4] sm:$0xf]
  %v256 = vld [vmem:[%s3 + $0xc8] sm:$0xff]
  %v257 = vld [vmem:[%s3 + $0xd0] sm:$0xff]
  %v258 = vld [vmem:[%s3 + $0xd8] sm:$0xf]
  %v259 = vld [vmem:[%s3 + $0xdc] sm:$0xff]
  %v260 = vld [vmem:[%s3 + $0xe4] sm:$0xff]
  %v261 = vld [vmem:[%s3 + $0xec] sm:$0xf]
  %v262 = vld [vmem:[%s3 + $0xf0] sm:$0xff]
  %v263 = vld [vmem:[%s3 + $0xf8] sm:$0xff]
  %v264 = vld [vmem:[%s3 + $0x100] sm:$0xf]
  %v265 = vld [vmem:[%s3 + $0x104] sm:$0xff]
  %v266 = vld [vmem:[%s3 + $0x10c] sm:$0xff]
  %v267 = vld [vmem:[%s3 + $0x114] sm:$0xf]
  %v268 = vld [vmem:[%s3 + $0x118] sm:$0xff]
  %v269 = vld [vmem:[%s3 + $0x120] sm:$0xff]
  %v270 = vld [vmem:[%s3 + $0x128] sm:$0xf]
  %v271 = vld [vmem:[%s3 + $0x12c] sm:$0xff]
  %v272 = vld [vmem:[%s3 + $0x134] sm:$0xff]
  %v273 = vld [vmem:[%s3 + $0x13c] sm:$0xf]
  %v274 = vld [vmem:[%s3 + $0x140] sm:$0xff]
  %v275 = vld [vmem:[%s3 + $0x148] sm:$0xff]
  %v276 = vld [vmem:[%s3 + $0x150] sm:$0xf]
  %v277 = vld [vmem:[%s3 + $0x154] sm:$0xff]
  %v278 = vld [vmem:[%s3 + $0x15c] sm:$0xff]
  %v279 = vld [vmem:[%s3 + $0x164] sm:$0xf]
  %v280 = vld [vmem:[%s3 + $0x168] sm:$0xff]
  %v281 = vld [vmem:[%s3 + $0x170] sm:$0xff]
  %v282 = vld [vmem:[%s3 + $0x178] sm:$0xf]
  %v283 = vld [vmem:[%s3 + $0x17c] sm:$0xff]
  %v284 = vld [vmem:[%s3 + $0x184] sm:$0xff]
  %v285 = vld [vmem:[%s3 + $0x18c] sm:$0xf]
  %v286 = vld [vmem:[%s3 + $0x190] sm:$0xff]
  %v287 = vld [vmem:[%s3 + $0x198] sm:$0xff]
  %v288 = vld [vmem:[%s3 + $0x1a0] sm:$0xf]
  %v289 = vld [vmem:[%s3 + $0x1a4] sm:$0xff]
  %v290 = vld [vmem:[%s3 + $0x1ac] sm:$0xff]
  %v291 = vld [vmem:[%s3 + $0x1b4] sm:$0xf]
  %v292 = vld [vmem:[%s3 + $0x1b8] sm:$0xff]
  %v293 = vld [vmem:[%s3 + $0x1c0] sm:$0xff]
  %v294 = vld [vmem:[%s3 + $0x1c8] sm:$0xf]
  %v295 = vld [vmem:[%s3 + $0x1cc] sm:$0xff]
  %v296 = vld [vmem:[%s3 + $0x1d4] sm:$0xff]
  %v297 = vld [vmem:[%s3 + $0x1dc] sm:$0xf]
  %v298 = vld [vmem:[%s3 + $0x1e0] sm:$0xff]
  %v299 = vld [vmem:[%s3 + $0x1e8] sm:$0xff]
  %v300 = vld [vmem:[%s3 + $0x1f0] sm:$0xf]
  %v301 = vld [vmem:[%s3 + $0x1f4] sm:$0xff]
  %v302 = vld [vmem:[%s3 + $0x1fc] sm:$0xff]
  %v303 = vld [vmem:[%s3 + $0x204] sm:$0xf]
  %v304 = vld [vmem:[%s3 + $0x208] sm:$0xff]
  %v305 = vld [vmem:[%s3 + $0x210] sm:$0xff]
  %v306 = vld [vmem:[%s3 + $0x218] sm:$0xf]
  %v307 = vld [vmem:[%s3 + $0x21c] sm:$0xff]
  %v308 = vld [vmem:[%s3 + $0x224] sm:$0xff]
  %v309 = vld [vmem:[%s3 + $0x22c] sm:$0xf]
  %v310 = vld [vmem:[%s3 + $0x230] sm:$0xff]
  %v311 = vld [vmem:[%s3 + $0x238] sm:$0xff]
  %v312 = vld [vmem:[%s3 + $0x240] sm:$0xf]
  %v313 = vld [vmem:[%s3 + $0x244] sm:$0xff]
  %v314 = vld [vmem:[%s3 + $0x24c] sm:$0xff]
  %v315 = vld [vmem:[%s3 + $0x254] sm:$0xf]
  %v316 = vld [vmem:[%s3 + $0x258] sm:$0xff]
  %v317 = vld [vmem:[%s3 + $0x260] sm:$0xff]
  %v318 = vld [vmem:[%s3 + $0x268] sm:$0xf]
  %v319 = vld [vmem:[%s3 + $0x26c] sm:$0xff]
  %v320 = vld [vmem:[%s3 + $0x274] sm:$0xff]
  %v321 = vld [vmem:[%s3 + $0x27c] sm:$0xf]
  %v322 = vld [vmem:[%s3 + $0x280] sm:$0xff]
  %v323 = vld [vmem:[%s3 + $0x288] sm:$0xff]
  %v324 = vld [vmem:[%s3 + $0x290] sm:$0xf]
  %v325 = vld [vmem:[%s3 + $0x294] sm:$0xff]
  %v326 = vld [vmem:[%s3 + $0x29c] sm:$0xff]
  %v327 = vld [vmem:[%s3 + $0x2a4] sm:$0xf]
  %v328 = vld [vmem:[%s4] sm:$0x1f]
  %v330 = vlaneseq
  %v331 = vshrl.u32 %v330, 7
  %v332 = vsub.s32 0, %v331
  %v333 = vrot.slane %v328, %v332
  %v334 = vlaneseq
  %v335 = vshrl.u32 %v334, 7
  %v336 = vsub.s32 1, %v335
  %v337 = vrot.slane %v328, %v336
  %v338 = vlaneseq
  %v339 = vshrl.u32 %v338, 7
  %v340 = vsub.s32 2, %v339
  %v341 = vrot.slane %v328, %v340
  %v342 = vlaneseq
  %v343 = vshrl.u32 %v342, 7
  %v344 = vsub.s32 3, %v343
  %v345 = vrot.slane %v328, %v344
  %v346 = vlaneseq
  %v347 = vshrl.u32 %v346, 7
  %v348 = vsub.s32 4, %v347
  %v349 = vrot.slane %v328, %v348
  %v457 = vunpack.c.l.b16 %v226
  %v458 = vunpack.c.h.b16 %v226
  %v459 = vunpack.c.l.b16 %v227
  %v460 = vunpack.c.h.b16 %v227
  %v461 = vunpack.c.l.b16 %v228
  %v462 = vunpack.c.l.b16 %v229
  %v463 = vunpack.c.h.b16 %v229
  %v464 = vunpack.c.l.b16 %v230
  %v465 = vunpack.c.h.b16 %v230
  %v466 = vunpack.c.l.b16 %v231
  %v467 = vunpack.c.l.b16 %v232
  %v468 = vunpack.c.h.b16 %v232
  %v469 = vunpack.c.l.b16 %v233
  %v470 = vunpack.c.h.b16 %v233
  %v471 = vunpack.c.l.b16 %v234
  %v472 = vunpack.c.l.b16 %v235
  %v473 = vunpack.c.h.b16 %v235
  %v474 = vunpack.c.l.b16 %v236
  %v475 = vunpack.c.h.b16 %v236
  %v476 = vunpack.c.l.b16 %v237
  %v477 = vunpack.c.l.b16 %v238
  %v478 = vunpack.c.h.b16 %v238
  %v479 = vunpack.c.l.b16 %v239
  %v480 = vunpack.c.h.b16 %v239
  %v481 = vunpack.c.l.b16 %v240
  %v482 = vunpack.c.l.b16 %v241
  %v483 = vunpack.c.h.b16 %v241
  %v484 = vunpack.c.l.b16 %v242
  %v485 = vunpack.c.h.b16 %v242
  %v486 = vunpack.c.l.b16 %v243
  %v487 = vunpack.c.l.b16 %v244
  %v488 = vunpack.c.h.b16 %v244
  %v489 = vunpack.c.l.b16 %v245
  %v490 = vunpack.c.h.b16 %v245
  %v491 = vunpack.c.l.b16 %v246
  %v492 = vunpack.c.l.b16 %v247
  %v493 = vunpack.c.h.b16 %v247
  %v494 = vunpack.c.l.b16 %v248
  %v495 = vunpack.c.h.b16 %v248
  %v496 = vunpack.c.l.b16 %v249
  %v497 = vunpack.c.l.b16 %v250
  %v498 = vunpack.c.h.b16 %v250
  %v499 = vunpack.c.l.b16 %v251
  %v500 = vunpack.c.h.b16 %v251
  %v501 = vunpack.c.l.b16 %v252
  %v502 = vunpack.c.l.b16 %v253
  %v503 = vunpack.c.h.b16 %v253
  %v504 = vunpack.c.l.b16 %v254
  %v505 = vunpack.c.h.b16 %v254
  %v506 = vunpack.c.l.b16 %v255
  %v507 = vunpack.c.l.b16 %v256
  %v508 = vunpack.c.h.b16 %v256
  %v509 = vunpack.c.l.b16 %v257
  %v510 = vunpack.c.h.b16 %v257
  %v511 = vunpack.c.l.b16 %v258
  %v512 = vunpack.c.l.b16 %v259
  %v513 = vunpack.c.h.b16 %v259
  %v514 = vunpack.c.l.b16 %v260
  %v515 = vunpack.c.h.b16 %v260
  %v516 = vunpack.c.l.b16 %v261
  %v517 = vunpack.c.l.b16 %v262
  %v518 = vunpack.c.h.b16 %v262
  %v519 = vunpack.c.l.b16 %v263
  %v520 = vunpack.c.h.b16 %v263
  %v521 = vunpack.c.l.b16 %v264
  %v522 = vunpack.c.l.b16 %v265
  %v523 = vunpack.c.h.b16 %v265
  %v524 = vunpack.c.l.b16 %v266
  %v525 = vunpack.c.h.b16 %v266
  %v526 = vunpack.c.l.b16 %v267
  %v527 = vunpack.c.l.b16 %v268
  %v528 = vunpack.c.h.b16 %v268
  %v529 = vunpack.c.l.b16 %v269
  %v530 = vunpack.c.h.b16 %v269
  %v531 = vunpack.c.l.b16 %v270
  %v532 = vunpack.c.l.b16 %v271
  %v533 = vunpack.c.h.b16 %v271
  %v534 = vunpack.c.l.b16 %v272
  %v535 = vunpack.c.h.b16 %v272
  %v536 = vunpack.c.l.b16 %v273
  %v537 = vunpack.c.l.b16 %v274
  %v538 = vunpack.c.h.b16 %v274
  %v539 = vunpack.c.l.b16 %v275
  %v540 = vunpack.c.h.b16 %v275
  %v541 = vunpack.c.l.b16 %v276
  %v542 = vunpack.c.l.b16 %v277
  %v543 = vunpack.c.h.b16 %v277
  %v544 = vunpack.c.l.b16 %v278
  %v545 = vunpack.c.h.b16 %v278
  %v546 = vunpack.c.l.b16 %v279
  %v547 = vunpack.c.l.b16 %v280
  %v548 = vunpack.c.h.b16 %v280
  %v549 = vunpack.c.l.b16 %v281
  %v550 = vunpack.c.h.b16 %v281
  %v551 = vunpack.c.l.b16 %v282
  %v552 = vunpack.c.l.b16 %v283
  %v553 = vunpack.c.h.b16 %v283
  %v554 = vunpack.c.l.b16 %v284
  %v555 = vunpack.c.h.b16 %v284
  %v556 = vunpack.c.l.b16 %v285
  %v557 = vunpack.c.l.b16 %v286
  %v558 = vunpack.c.h.b16 %v286
  %v559 = vunpack.c.l.b16 %v287
  %v560 = vunpack.c.h.b16 %v287
  %v561 = vunpack.c.l.b16 %v288
  %v562 = vunpack.c.l.b16 %v289
  %v563 = vunpack.c.h.b16 %v289
  %v564 = vunpack.c.l.b16 %v290
  %v565 = vunpack.c.h.b16 %v290
  %v566 = vunpack.c.l.b16 %v291
  %v567 = vunpack.c.l.b16 %v292
  %v568 = vunpack.c.h.b16 %v292
  %v569 = vunpack.c.l.b16 %v293
  %v570 = vunpack.c.h.b16 %v293
  %v571 = vunpack.c.l.b16 %v294
  %v572 = vunpack.c.l.b16 %v295
  %v573 = vunpack.c.h.b16 %v295
  %v574 = vunpack.c.l.b16 %v296
  %v575 = vunpack.c.h.b16 %v296
  %v576 = vunpack.c.l.b16 %v297
  %v577 = vunpack.c.l.b16 %v298
  %v578 = vunpack.c.h.b16 %v298
  %v579 = vunpack.c.l.b16 %v299
  %v580 = vunpack.c.h.b16 %v299
  %v581 = vunpack.c.l.b16 %v300
  %v582 = vunpack.c.l.b16 %v301
  %v583 = vunpack.c.h.b16 %v301
  %v584 = vunpack.c.l.b16 %v302
  %v585 = vunpack.c.h.b16 %v302
  %v586 = vunpack.c.l.b16 %v303
  %v587 = vunpack.c.l.b16 %v304
  %v588 = vunpack.c.h.b16 %v304
  %v589 = vunpack.c.l.b16 %v305
  %v590 = vunpack.c.h.b16 %v305
  %v591 = vunpack.c.l.b16 %v306
  %v592 = vunpack.c.l.b16 %v307
  %v593 = vunpack.c.h.b16 %v307
  %v594 = vunpack.c.l.b16 %v308
  %v595 = vunpack.c.h.b16 %v308
  %v596 = vunpack.c.l.b16 %v309
  %v597 = vunpack.c.l.b16 %v310
  %v598 = vunpack.c.h.b16 %v310
  %v599 = vunpack.c.l.b16 %v311
  %v600 = vunpack.c.h.b16 %v311
  %v601 = vunpack.c.l.b16 %v312
  %v602 = vunpack.c.l.b16 %v313
  %v603 = vunpack.c.h.b16 %v313
  %v604 = vunpack.c.l.b16 %v314
  %v605 = vunpack.c.h.b16 %v314
  %v606 = vunpack.c.l.b16 %v315
  %v607 = vunpack.c.l.b16 %v316
  %v608 = vunpack.c.h.b16 %v316
  %v609 = vunpack.c.l.b16 %v317
  %v610 = vunpack.c.h.b16 %v317
  %v611 = vunpack.c.l.b16 %v318
  %v612 = vunpack.c.l.b16 %v319
  %v613 = vunpack.c.h.b16 %v319
  %v614 = vunpack.c.l.b16 %v320
  %v615 = vunpack.c.h.b16 %v320
  %v616 = vunpack.c.l.b16 %v321
  %v617 = vunpack.c.l.b16 %v322
  %v618 = vunpack.c.h.b16 %v322
  %v619 = vunpack.c.l.b16 %v323
  %v620 = vunpack.c.h.b16 %v323
  %v621 = vunpack.c.l.b16 %v324
  %v622 = vunpack.c.l.b16 %v325
  %v623 = vunpack.c.h.b16 %v325
  %v624 = vunpack.c.l.b16 %v326
  %v625 = vunpack.c.h.b16 %v326
  %v626 = vunpack.c.l.b16 %v327
  %v627 = vpack.c.b16 %v462, %v457
  %v628 = vpack.c.b16 %v463, %v458
  %v629 = vpack.c.b16 %v464, %v459
  %v630 = vpack.c.b16 %v465, %v460
  %v631 = vpack.c.b16 %v466, %v461
  %v632 = vpack.c.b16 %v472, %v467
  %v633 = vpack.c.b16 %v473, %v468
  %v634 = vpack.c.b16 %v474, %v469
  %v635 = vpack.c.b16 %v475, %v470
  %v636 = vpack.c.b16 %v476, %v471
  %v637 = vpack.c.b16 %v482, %v477
  %v638 = vpack.c.b16 %v483, %v478
  %v639 = vpack.c.b16 %v484, %v479
  %v640 = vpack.c.b16 %v485, %v480
  %v641 = vpack.c.b16 %v486, %v481
  %v642 = vpack.c.b16 %v492, %v487
  %v643 = vpack.c.b16 %v493, %v488
  %v644 = vpack.c.b16 %v494, %v489
  %v645 = vpack.c.b16 %v495, %v490
  %v646 = vpack.c.b16 %v496, %v491
  %v647 = vpack.c.b16 %v502, %v497
  %v648 = vpack.c.b16 %v503, %v498
  %v649 = vpack.c.b16 %v504, %v499
  %v650 = vpack.c.b16 %v505, %v500
  %v651 = vpack.c.b16 %v506, %v501
  %v652 = vpack.c.b16 %v512, %v507
  %v653 = vpack.c.b16 %v513, %v508
  %v654 = vpack.c.b16 %v514, %v509
  %v655 = vpack.c.b16 %v515, %v510
  %v656 = vpack.c.b16 %v516, %v511
  %v657 = vpack.c.b16 %v522, %v517
  %v658 = vpack.c.b16 %v523, %v518
  %v659 = vpack.c.b16 %v524, %v519
  %v660 = vpack.c.b16 %v525, %v520
  %v661 = vpack.c.b16 %v526, %v521
  %v662 = vpack.c.b16 %v532, %v527
  %v663 = vpack.c.b16 %v533, %v528
  %v664 = vpack.c.b16 %v534, %v529
  %v665 = vpack.c.b16 %v535, %v530
  %v666 = vpack.c.b16 %v536, %v531
  %v667 = vpack.c.b16 %v542, %v537
  %v668 = vpack.c.b16 %v543, %v538
  %v669 = vpack.c.b16 %v544, %v539
  %v670 = vpack.c.b16 %v545, %v540
  %v671 = vpack.c.b16 %v546, %v541
  %v672 = vpack.c.b16 %v552, %v547
  %v673 = vpack.c.b16 %v553, %v548
  %v674 = vpack.c.b16 %v554, %v549
  %v675 = vpack.c.b16 %v555, %v550
  %v676 = vpack.c.b16 %v556, %v551
  %v677 = vpack.c.b16 %v562, %v557
  %v678 = vpack.c.b16 %v563, %v558
  %v679 = vpack.c.b16 %v564, %v559
  %v680 = vpack.c.b16 %v565, %v560
  %v681 = vpack.c.b16 %v566, %v561
  %v682 = vpack.c.b16 %v572, %v567
  %v683 = vpack.c.b16 %v573, %v568
  %v684 = vpack.c.b16 %v574, %v569
  %v685 = vpack.c.b16 %v575, %v570
  %v686 = vpack.c.b16 %v576, %v571
  %v687 = vpack.c.b16 %v582, %v577
  %v688 = vpack.c.b16 %v583, %v578
  %v689 = vpack.c.b16 %v584, %v579
  %v690 = vpack.c.b16 %v585, %v580
  %v691 = vpack.c.b16 %v586, %v581
  %v692 = vpack.c.b16 %v592, %v587
  %v693 = vpack.c.b16 %v593, %v588
  %v694 = vpack.c.b16 %v594, %v589
  %v695 = vpack.c.b16 %v595, %v590
  %v696 = vpack.c.b16 %v596, %v591
  %v697 = vpack.c.b16 %v602, %v597
  %v698 = vpack.c.b16 %v603, %v598
  %v699 = vpack.c.b16 %v604, %v599
  %v700 = vpack.c.b16 %v605, %v600
  %v701 = vpack.c.b16 %v606, %v601
  %v702 = vpack.c.b16 %v612, %v607
  %v703 = vpack.c.b16 %v613, %v608
  %v704 = vpack.c.b16 %v614, %v609
  %v705 = vpack.c.b16 %v615, %v610
  %v706 = vpack.c.b16 %v616, %v611
  %v707 = vpack.c.b16 %v622, %v617
  %v708 = vpack.c.b16 %v623, %v618
  %v709 = vpack.c.b16 %v624, %v619
  %v710 = vpack.c.b16 %v625, %v620
  %v711 = vpack.c.b16 %v626, %v621
  %vm797 = vcmask 130048
  %v799 = vsel %vm797, %v225, 0
  %801 = vmatprep.subr.bf16.mxu0 %v628
  %802 = vmatpush1.bf16.msra.mxu0 %v627
  %803 = vmatprep.subr.bf16.mxu0 %v633
  %804 = vmatpush1.bf16.msra.mxu0 %v632
  %805 = vmatprep.subr.bf16.mxu0 %v638
  %806 = vmatpush1.bf16.msra.mxu0 %v637
  %807 = vmatprep.subr.bf16.mxu0 %v643
  %808 = vmatpush1.bf16.msra.mxu0 %v642
  %809 = vmatprep.subr.bf16.mxu0 %v648
  %810 = vmatpush1.bf16.msra.mxu0 %v647
  %811 = vmatprep.subr.bf16.mxu0 %v653
  %812 = vmatpush1.bf16.msra.mxu0 %v652
  %813 = vmatprep.subr.bf16.mxu0 %v658
  %814 = vmatpush1.bf16.msra.mxu0 %v657
  %815 = vmatprep.subr.bf16.mxu0 %v663
  %816 = vmatpush1.bf16.msra.mxu0 %v662
  %817 = vmatprep.subr.bf16.mxu0 %v668
  %818 = vmatpush1.bf16.msra.mxu0 %v667
  %819 = vmatprep.subr.bf16.mxu0 %v673
  %820 = vmatpush1.bf16.msra.mxu0 %v672
  %821 = vmatprep.subr.bf16.mxu0 %v678
  %822 = vmatpush1.bf16.msra.mxu0 %v677
  %823 = vmatprep.subr.bf16.mxu0 %v683
  %824 = vmatpush1.bf16.msra.mxu0 %v682
  %825 = vmatprep.subr.bf16.mxu0 %v688
  %826 = vmatpush1.bf16.msra.mxu0 %v687
  %827 = vmatprep.subr.bf16.mxu0 %v693
  %828 = vmatpush1.bf16.msra.mxu0 %v692
  %829 = vmatprep.subr.bf16.mxu0 %v698
  %830 = vmatpush1.bf16.msra.mxu0 %v697
  %831 = vmatprep.subr.bf16.mxu0 %v703
  %832 = vmatpush1.bf16.msra.mxu0 %v702
  %833 = vmatprep.mubr.bf16.mxu0 %v224
  %834 = vmatmul.mubr.bf16.gmra.mrb[0].mxu0 %v223
  %v835 = vpop.f32.mrb[0].mxu0
  %v836 = vadd.f32 %v333, %v835
  %v837 = vpop.f32.mrb[0].mxu0
  %v838 = vadd.f32 %v337, %v837
  %v839 = vpop.f32.mrb[0].mxu0
  %v840 = vadd.f32 %v333, %v839
  %v841 = vpop.f32.mrb[0].mxu0
  %v842 = vadd.f32 %v337, %v841
  %843 = vdwg.mxu0
  %844 = vmatprep.subr.bf16.mxu0 %v708
  %845 = vmatpush1.bf16.msra.mxu0 %v707
  %846 = vmatprep.subr.bf16.mxu0 0
  %847 = vmatpush1.bf16.msra.mxu0 0
  %848 = vmatprep.subr.bf16.mxu0 0
  %849 = vmatpush1.bf16.msra.mxu0 0
  %850 = vmatprep.subr.bf16.mxu0 0
  %851 = vmatpush1.bf16.msra.mxu0 0
  %852 = vmatprep.subr.bf16.mxu0 0
  %853 = vmatpush1.bf16.msra.mxu0 0
  %854 = vmatprep.subr.bf16.mxu0 0
  %855 = vmatpush1.bf16.msra.mxu0 0
  %856 = vmatprep.subr.bf16.mxu0 0
  %857 = vmatpush1.bf16.msra.mxu0 0
  %858 = vmatprep.subr.bf16.mxu0 0
  %859 = vmatpush1.bf16.msra.mxu0 0
  %860 = vmatprep.subr.bf16.mxu0 0
  %861 = vmatpush1.bf16.msra.mxu0 0
  %862 = vmatprep.subr.bf16.mxu0 0
  %863 = vmatpush1.bf16.msra.mxu0 0
  %864 = vmatprep.subr.bf16.mxu0 0
  %865 = vmatpush1.bf16.msra.mxu0 0
  %866 = vmatprep.subr.bf16.mxu0 0
  %867 = vmatpush1.bf16.msra.mxu0 0
  %868 = vmatprep.subr.bf16.mxu0 0
  %869 = vmatpush1.bf16.msra.mxu0 0
  %870 = vmatprep.subr.bf16.mxu0 0
  %871 = vmatpush1.bf16.msra.mxu0 0
  %872 = vmatprep.subr.bf16.mxu0 0
  %873 = vmatpush1.bf16.msra.mxu0 0
  %874 = vmatprep.subr.bf16.mxu0 0
  %875 = vmatpush1.bf16.msra.mxu0 0
  %876 = vmatprep.mubr.bf16.mxu0 0
  %877 = vmatmul.mubr.bf16.gmra.mrb[0].mxu0 %v799
  %v878 = vpop.f32.mrb[0].mxu0
  %v879 = vadd.f32 %v836, %v878
  %v880 = vpop.f32.mrb[0].mxu0
  %v881 = vadd.f32 %v838, %v880
  %v882 = vpop.f32.mrb[0].mxu0
  %v883 = vadd.f32 %v840, %v882
  %v884 = vpop.f32.mrb[0].mxu0
  %v885 = vadd.f32 %v842, %v884
  %886 = vdwg.mxu0
  %887 = vmatprep.subr.bf16.mxu0 %v630
  %888 = vmatpush1.bf16.msra.mxu0 %v629
  %889 = vmatprep.subr.bf16.mxu0 %v635
  %890 = vmatpush1.bf16.msra.mxu0 %v634
  %891 = vmatprep.subr.bf16.mxu0 %v640
  %892 = vmatpush1.bf16.msra.mxu0 %v639
  %893 = vmatprep.subr.bf16.mxu0 %v645
  %894 = vmatpush1.bf16.msra.mxu0 %v644
  %895 = vmatprep.subr.bf16.mxu0 %v650
  %896 = vmatpush1.bf16.msra.mxu0 %v649
  %897 = vmatprep.subr.bf16.mxu0 %v655
  %898 = vmatpush1.bf16.msra.mxu0 %v654
  %899 = vmatprep.subr.bf16.mxu0 %v660
  %900 = vmatpush1.bf16.msra.mxu0 %v659
  %901 = vmatprep.subr.bf16.mxu0 %v665
  %902 = vmatpush1.bf16.msra.mxu0 %v664
  %903 = vmatprep.subr.bf16.mxu0 %v670
  %904 = vmatpush1.bf16.msra.mxu0 %v669
  %905 = vmatprep.subr.bf16.mxu0 %v675
  %906 = vmatpush1.bf16.msra.mxu0 %v674
  %907 = vmatprep.subr.bf16.mxu0 %v680
  %908 = vmatpush1.bf16.msra.mxu0 %v679
  %909 = vmatprep.subr.bf16.mxu0 %v685
  %910 = vmatpush1.bf16.msra.mxu0 %v684
  %911 = vmatprep.subr.bf16.mxu0 %v690
  %912 = vmatpush1.bf16.msra.mxu0 %v689
  %913 = vmatprep.subr.bf16.mxu0 %v695
  %914 = vmatpush1.bf16.msra.mxu0 %v694
  %915 = vmatprep.subr.bf16.mxu0 %v700
  %916 = vmatpush1.bf16.msra.mxu0 %v699
  %917 = vmatprep.subr.bf16.mxu0 %v705
  %918 = vmatpush1.bf16.msra.mxu0 %v704
  %919 = vmatprep.mubr.bf16.mxu0 %v224
  %920 = vmatmul.mubr.bf16.gmra.mrb[0].mxu0 %v223
  %v921 = vpop.f32.mrb[0].mxu0
  %v922 = vadd.f32 %v341, %v921
  %v923 = vpop.f32.mrb[0].mxu0
  %v924 = vadd.f32 %v345, %v923
  %v925 = vpop.f32.mrb[0].mxu0
  %v926 = vadd.f32 %v341, %v925
  %v927 = vpop.f32.mrb[0].mxu0
  %v928 = vadd.f32 %v345, %v927
  %929 = vdwg.mxu0
  %930 = vmatprep.subr.bf16.mxu0 %v710
  %931 = vmatpush1.bf16.msra.mxu0 %v709
  %932 = vmatprep.subr.bf16.mxu0 0
  %933 = vmatpush1.bf16.msra.mxu0 0
  %934 = vmatprep.subr.bf16.mxu0 0
  %935 = vmatpush1.bf16.msra.mxu0 0
  %936 = vmatprep.subr.bf16.mxu0 0
  %937 = vmatpush1.bf16.msra.mxu0 0
  %938 = vmatprep.subr.bf16.mxu0 0
  %939 = vmatpush1.bf16.msra.mxu0 0
  %940 = vmatprep.subr.bf16.mxu0 0
  %941 = vmatpush1.bf16.msra.mxu0 0
  %942 = vmatprep.subr.bf16.mxu0 0
  %943 = vmatpush1.bf16.msra.mxu0 0
  %944 = vmatprep.subr.bf16.mxu0 0
  %945 = vmatpush1.bf16.msra.mxu0 0
  %946 = vmatprep.subr.bf16.mxu0 0
  %947 = vmatpush1.bf16.msra.mxu0 0
  %948 = vmatprep.subr.bf16.mxu0 0
  %949 = vmatpush1.bf16.msra.mxu0 0
  %950 = vmatprep.subr.bf16.mxu0 0
  %951 = vmatpush1.bf16.msra.mxu0 0
  %952 = vmatprep.subr.bf16.mxu0 0
  %953 = vmatpush1.bf16.msra.mxu0 0
  %954 = vmatprep.subr.bf16.mxu0 0
  %955 = vmatpush1.bf16.msra.mxu0 0
  %956 = vmatprep.subr.bf16.mxu0 0
  %957 = vmatpush1.bf16.msra.mxu0 0
  %958 = vmatprep.subr.bf16.mxu0 0
  %959 = vmatpush1.bf16.msra.mxu0 0
  %960 = vmatprep.subr.bf16.mxu0 0
  %961 = vmatpush1.bf16.msra.mxu0 0
  %962 = vmatprep.mubr.bf16.mxu0 0
  %963 = vmatmul.mubr.bf16.gmra.mrb[0].mxu0 %v799
  %v964 = vpop.f32.mrb[0].mxu0
  %v965 = vadd.f32 %v922, %v964
  %v966 = vpop.f32.mrb[0].mxu0
  %v967 = vadd.f32 %v924, %v966
  %v968 = vpop.f32.mrb[0].mxu0
  %v969 = vadd.f32 %v926, %v968
  %v970 = vpop.f32.mrb[0].mxu0
  %v971 = vadd.f32 %v928, %v970
  %972 = vdwg.mxu0
  %973 = vmatprep.subr.bf16.mxu0 0
  %974 = vmatpush1.bf16.msra.mxu0 %v631
  %975 = vmatprep.subr.bf16.mxu0 0
  %976 = vmatpush1.bf16.msra.mxu0 %v636
  %977 = vmatprep.subr.bf16.mxu0 0
  %978 = vmatpush1.bf16.msra.mxu0 %v641
  %979 = vmatprep.subr.bf16.mxu0 0
  %980 = vmatpush1.bf16.msra.mxu0 %v646
  %981 = vmatprep.subr.bf16.mxu0 0
  %982 = vmatpush1.bf16.msra.mxu0 %v651
  %983 = vmatprep.subr.bf16.mxu0 0
  %984 = vmatpush1.bf16.msra.mxu0 %v656
  %985 = vmatprep.subr.bf16.mxu0 0
  %986 = vmatpush1.bf16.msra.mxu0 %v661
  %987 = vmatprep.subr.bf16.mxu0 0
  %988 = vmatpush1.bf16.msra.mxu0 %v666
  %989 = vmatprep.subr.bf16.mxu0 0
  %990 = vmatpush1.bf16.msra.mxu0 %v671
  %991 = vmatprep.subr.bf16.mxu0 0
  %992 = vmatpush1.bf16.msra.mxu0 %v676
  %993 = vmatprep.subr.bf16.mxu0 0
  %994 = vmatpush1.bf16.msra.mxu0 %v681
  %995 = vmatprep.subr.bf16.mxu0 0
  %996 = vmatpush1.bf16.msra.mxu0 %v686
  %997 = vmatprep.subr.bf16.mxu0 0
  %998 = vmatpush1.bf16.msra.mxu0 %v691
  %999 = vmatprep.subr.bf16.mxu0 0
  %1000 = vmatpush1.bf16.msra.mxu0 %v696
  %1001 = vmatprep.subr.bf16.mxu0 0
  %1002 = vmatpush1.bf16.msra.mxu0 %v701
  %1003 = vmatprep.subr.bf16.mxu0 0
  %1004 = vmatpush1.bf16.msra.mxu0 %v706
  %1005 = vmatprep.mubr.bf16.mxu0 %v224
  %1006 = vmatmul.mubr.bf16.gmra.mrb[0].mxu0 %v223
  %v1007 = vpop.f32.mrb[0].mxu0
  %v1008 = vadd.f32 %v349, %v1007
  %v1009 = vpop.f32.mrb[0].mxu0
  %v1010 = vpop.f32.mrb[0].mxu0
  %v1011 = vadd.f32 %v349, %v1010
  %v1012 = vpop.f32.mrb[0].mxu0
  %1013 = vdwg.mxu0
  %1014 = vmatprep.subr.bf16.mxu0 0
  %1015 = vmatpush1.bf16.msra.mxu0 %v711
  %1016 = vmatprep.subr.bf16.mxu0 0
  %1017 = vmatpush1.bf16.msra.mxu0 0
  %1018 = vmatprep.subr.bf16.mxu0 0
  %1019 = vmatpush1.bf16.msra.mxu0 0
  %1020 = vmatprep.subr.bf16.mxu0 0
  %1021 = vmatpush1.bf16.msra.mxu0 0
  %1022 = vmatprep.subr.bf16.mxu0 0
  %1023 = vmatpush1.bf16.msra.mxu0 0
  %1024 = vmatprep.subr.bf16.mxu0 0
  %1025 = vmatpush1.bf16.msra.mxu0 0
  %1026 = vmatprep.subr.bf16.mxu0 0
  %1027 = vmatpush1.bf16.msra.mxu0 0
  %1028 = vmatprep.subr.bf16.mxu0 0
  %1029 = vmatpush1.bf16.msra.mxu0 0
  %1030 = vmatprep.subr.bf16.mxu0 0
  %1031 = vmatpush1.bf16.msra.mxu0 0
  %1032 = vmatprep.subr.bf16.mxu0 0
  %1033 = vmatpush1.bf16.msra.mxu0 0
  %1034 = vmatprep.subr.bf16.mxu0 0
  %1035 = vmatpush1.bf16.msra.mxu0 0
  %1036 = vmatprep.subr.bf16.mxu0 0
  %1037 = vmatpush1.bf16.msra.mxu0 0
  %1038 = vmatprep.subr.bf16.mxu0 0
  %1039 = vmatpush1.bf16.msra.mxu0 0
  %1040 = vmatprep.subr.bf16.mxu0 0
  %1041 = vmatpush1.bf16.msra.mxu0 0
  %1042 = vmatprep.subr.bf16.mxu0 0
  %1043 = vmatpush1.bf16.msra.mxu0 0
  %1044 = vmatprep.subr.bf16.mxu0 0
  %1045 = vmatpush1.bf16.msra.mxu0 0
  %1046 = vmatprep.mubr.bf16.mxu0 0
  %1047 = vmatmul.mubr.bf16.gmra.mrb[0].mxu0 %v799
  %v1048 = vpop.f32.mrb[0].mxu0
  %v1049 = vadd.f32 %v1008, %v1048
  %v1050 = vpop.f32.mrb[0].mxu0
  %v1051 = vpop.f32.mrb[0].mxu0
  %v1052 = vadd.f32 %v1011, %v1051
  %v1053 = vpop.f32.mrb[0].mxu0
  %1054 = vdwg.mxu0
  %v1055 = vmax.f32 %v879, 0.0
  %v1056 = vmax.f32 %v881, 0.0
  %v1057 = vmax.f32 %v965, 0.0
  %v1058 = vmax.f32 %v967, 0.0
  %v1059 = vmax.f32 %v1049, 0.0
  %v1060 = vmax.f32 %v883, 0.0
  %v1061 = vmax.f32 %v885, 0.0
  %v1062 = vmax.f32 %v969, 0.0
  %v1063 = vmax.f32 %v971, 0.0
  %v1064 = vmax.f32 %v1052, 0.0
  %v1065 = vpack.c.bf16 %v1060, %v1055
  %v1066 = vpack.c.bf16 %v1061, %v1056
  %v1067 = vpack.c.bf16 %v1062, %v1057
  %v1068 = vpack.c.bf16 %v1063, %v1058
  %v1069 = vpack.c.bf16 %v1064, %v1059
  %v1070 = vld [vmem:[%s5] sm:$0xff]
  %v1071 = vld [vmem:[%s5 + $0x8] sm:$0xf]
  %v1072 = vld [vmem:[%s5 + $0xc] sm:$0xff]
  %v1073 = vld [vmem:[%s5 + $0x14] sm:$0xf]
  %v1074 = vld [vmem:[%s5 + $0x18] sm:$0xff]
  %v1075 = vld [vmem:[%s5 + $0x20] sm:$0xf]
  %v1076 = vld [vmem:[%s5 + $0x24] sm:$0xff]
  %v1077 = vld [vmem:[%s5 + $0x2c] sm:$0xf]
  %v1078 = vld [vmem:[%s5 + $0x30] sm:$0xff]
  %v1079 = vld [vmem:[%s5 + $0x38] sm:$0xf]
  %v1080 = vld [vmem:[%s5 + $0x3c] sm:$0xff]
  %v1081 = vld [vmem:[%s5 + $0x44] sm:$0xf]
  %v1082 = vld [vmem:[%s5 + $0x48] sm:$0xff]
  %v1083 = vld [vmem:[%s5 + $0x50] sm:$0xf]
  %v1084 = vld [vmem:[%s5 + $0x54] sm:$0xff]
  %v1085 = vld [vmem:[%s5 + $0x5c] sm:$0xf]
  %v1086 = vld [vmem:[%s5 + $0x60] sm:$0xff]
  %v1087 = vld [vmem:[%s5 + $0x68] sm:$0xf]
  %v1088 = vld [vmem:[%s5 + $0x6c] sm:$0xff]
  %v1089 = vld [vmem:[%s5 + $0x74] sm:$0xf]
  %v1090 = vld [vmem:[%s5 + $0x78] sm:$0xff]
  %v1091 = vld [vmem:[%s5 + $0x80] sm:$0xf]
  %v1092 = vld [vmem:[%s5 + $0x84] sm:$0xff]
  %v1093 = vld [vmem:[%s5 + $0x8c] sm:$0xf]
  %v1094 = vld [vmem:[%s5 + $0x90] sm:$0xff]
  %v1095 = vld [vmem:[%s5 + $0x98] sm:$0xf]
  %v1096 = vld [vmem:[%s5 + $0x9c] sm:$0xff]
  %v1097 = vld [vmem:[%s5 + $0xa4] sm:$0xf]
  %v1098 = vld [vmem:[%s5 + $0xa8] sm:$0xff]
  %v1099 = vld [vmem:[%s5 + $0xb0] sm:$0xf]
  %v1100 = vld [vmem:[%s5 + $0xb4] sm:$0xff]
  %v1101 = vld [vmem:[%s5 + $0xbc] sm:$0xf]
  %v1102 = vld [vmem:[%s5 + $0xc0] sm:$0xff]
  %v1103 = vld [vmem:[%s5 + $0xc8] sm:$0xf]
  %v1104 = vld [vmem:[%s5 + $0xcc] sm:$0xff]
  %v1105 = vld [vmem:[%s5 + $0xd4] sm:$0xf]
  %v1106 = vld [vmem:[%s5 + $0xd8] sm:$0xff]
  %v1107 = vld [vmem:[%s5 + $0xe0] sm:$0xf]
  %v1108 = vld [vmem:[%s5 + $0xe4] sm:$0xff]
  %v1109 = vld [vmem:[%s5 + $0xec] sm:$0xf]
  %v1110 = vld [vmem:[%s5 + $0xf0] sm:$0xff]
  %v1111 = vld [vmem:[%s5 + $0xf8] sm:$0xf]
  %v1112 = vld [vmem:[%s5 + $0xfc] sm:$0xff]
  %v1113 = vld [vmem:[%s5 + $0x104] sm:$0xf]
  %v1114 = vld [vmem:[%s5 + $0x108] sm:$0xff]
  %v1115 = vld [vmem:[%s5 + $0x110] sm:$0xf]
  %v1116 = vld [vmem:[%s5 + $0x114] sm:$0xff]
  %v1117 = vld [vmem:[%s5 + $0x11c] sm:$0xf]
  %v1118 = vld [vmem:[%s5 + $0x120] sm:$0xff]
  %v1119 = vld [vmem:[%s5 + $0x128] sm:$0xf]
  %v1120 = vld [vmem:[%s5 + $0x12c] sm:$0xff]
  %v1121 = vld [vmem:[%s5 + $0x134] sm:$0xf]
  %v1122 = vld [vmem:[%s5 + $0x138] sm:$0xff]
  %v1123 = vld [vmem:[%s5 + $0x140] sm:$0xf]
  %v1124 = vld [vmem:[%s5 + $0x144] sm:$0xff]
  %v1125 = vld [vmem:[%s5 + $0x14c] sm:$0xf]
  %v1126 = vld [vmem:[%s5 + $0x150] sm:$0xff]
  %v1127 = vld [vmem:[%s5 + $0x158] sm:$0xf]
  %v1128 = vld [vmem:[%s5 + $0x15c] sm:$0xff]
  %v1129 = vld [vmem:[%s5 + $0x164] sm:$0xf]
  %v1130 = vld [vmem:[%s5 + $0x168] sm:$0xff]
  %v1131 = vld [vmem:[%s5 + $0x170] sm:$0xf]
  %v1132 = vld [vmem:[%s5 + $0x174] sm:$0xff]
  %v1133 = vld [vmem:[%s5 + $0x17c] sm:$0xf]
  %v1134 = vld [vmem:[%s5 + $0x180] sm:$0xff]
  %v1135 = vld [vmem:[%s5 + $0x188] sm:$0xf]
  %v1136 = vld [vmem:[%s5 + $0x18c] sm:$0xff]
  %v1137 = vld [vmem:[%s5 + $0x194] sm:$0xf]
  %v1138 = vld [vmem:[%s5 + $0x198] sm:$0xff]
  %v1139 = vld [vmem:[%s5 + $0x1a0] sm:$0xf]
  %v1140 = vld [vmem:[%s5 + $0x1a4] sm:$0xff]
  %v1141 = vld [vmem:[%s5 + $0x1ac] sm:$0xf]
  %v1142 = vld [vmem:[%s5 + $0x1b0] sm:$0xff]
  %v1143 = vld [vmem:[%s5 + $0x1b8] sm:$0xf]
  %v1144 = vld [vmem:[%s5 + $0x1bc] sm:$0xff]
  %v1145 = vld [vmem:[%s5 + $0x1c4] sm:$0xf]
  %v1146 = vld [vmem:[%s5 + $0x1c8] sm:$0xff]
  %v1147 = vld [vmem:[%s5 + $0x1d0] sm:$0xf]
  %v1148 = vld [vmem:[%s5 + $0x1d4] sm:$0xff]
  %v1149 = vld [vmem:[%s5 + $0x1dc] sm:$0xf]
  %v1150 = vld [vmem:[%s5 + $0x1e0] sm:$0xff]
  %v1151 = vld [vmem:[%s5 + $0x1e8] sm:$0xf]
  %v1152 = vld [vmem:[%s5 + $0x1ec] sm:$0xff]
  %v1153 = vld [vmem:[%s5 + $0x1f4] sm:$0xf]
  %v1154 = vld [vmem:[%s5 + $0x1f8] sm:$0xff]
  %v1155 = vld [vmem:[%s5 + $0x200] sm:$0xf]
  %v1156 = vld [vmem:[%s5 + $0x204] sm:$0xff]
  %v1157 = vld [vmem:[%s5 + $0x20c] sm:$0xf]
  %v1158 = vld [vmem:[%s5 + $0x210] sm:$0xff]
  %v1159 = vld [vmem:[%s5 + $0x218] sm:$0xf]
  %v1160 = vld [vmem:[%s5 + $0x21c] sm:$0xff]
  %v1161 = vld [vmem:[%s5 + $0x224] sm:$0xf]
  %v1162 = vld [vmem:[%s5 + $0x228] sm:$0xff]
  %v1163 = vld [vmem:[%s5 + $0x230] sm:$0xf]
  %v1164 = vld [vmem:[%s5 + $0x234] sm:$0xff]
  %v1165 = vld [vmem:[%s5 + $0x23c] sm:$0xf]
  %v1166 = vld [vmem:[%s5 + $0x240] sm:$0xff]
  %v1167 = vld [vmem:[%s5 + $0x248] sm:$0xf]
  %v1168 = vld [vmem:[%s5 + $0x24c] sm:$0xff]
  %v1169 = vld [vmem:[%s5 + $0x254] sm:$0xf]
  %v1170 = vld [vmem:[%s5 + $0x258] sm:$0xff]
  %v1171 = vld [vmem:[%s5 + $0x260] sm:$0xf]
  %v1172 = vld [vmem:[%s5 + $0x264] sm:$0xff]
  %v1173 = vld [vmem:[%s5 + $0x26c] sm:$0xf]
  %v1174 = vld [vmem:[%s5 + $0x270] sm:$0xff]
  %v1175 = vld [vmem:[%s5 + $0x278] sm:$0xf]
  %v1176 = vld [vmem:[%s5 + $0x27c] sm:$0xff]
  %v1177 = vld [vmem:[%s5 + $0x284] sm:$0xf]
  %v1178 = vld [vmem:[%s5 + $0x288] sm:$0xff]
  %v1179 = vld [vmem:[%s5 + $0x290] sm:$0xf]
  %v1180 = vld [vmem:[%s5 + $0x294] sm:$0xff]
  %v1181 = vld [vmem:[%s5 + $0x29c] sm:$0xf]
  %v1182 = vld [vmem:[%s5 + $0x2a0] sm:$0xff]
  %v1183 = vld [vmem:[%s5 + $0x2a8] sm:$0xf]
  %v1184 = vld [vmem:[%s5 + $0x2ac] sm:$0xff]
  %v1185 = vld [vmem:[%s5 + $0x2b4] sm:$0xf]
  %v1186 = vld [vmem:[%s5 + $0x2b8] sm:$0xff]
  %v1187 = vld [vmem:[%s5 + $0x2c0] sm:$0xf]
  %v1188 = vld [vmem:[%s5 + $0x2c4] sm:$0xff]
  %v1189 = vld [vmem:[%s5 + $0x2cc] sm:$0xf]
  %v1190 = vld [vmem:[%s5 + $0x2d0] sm:$0xff]
  %v1191 = vld [vmem:[%s5 + $0x2d8] sm:$0xf]
  %v1192 = vld [vmem:[%s5 + $0x2dc] sm:$0xff]
  %v1193 = vld [vmem:[%s5 + $0x2e4] sm:$0xf]
  %v1194 = vld [vmem:[%s5 + $0x2e8] sm:$0xff]
  %v1195 = vld [vmem:[%s5 + $0x2f0] sm:$0xf]
  %v1196 = vld [vmem:[%s5 + $0x2f4] sm:$0xff]
  %v1197 = vld [vmem:[%s5 + $0x2fc] sm:$0xf]
  %v1198 = vld [vmem:[%s5 + $0x300] sm:$0xff]
  %v1199 = vld [vmem:[%s5 + $0x308] sm:$0xf]
  %v1200 = vld [vmem:[%s5 + $0x30c] sm:$0xff]
  %v1201 = vld [vmem:[%s5 + $0x314] sm:$0xf]
  %v1202 = vld [vmem:[%s5 + $0x318] sm:$0xff]
  %v1203 = vld [vmem:[%s5 + $0x320] sm:$0xf]
  %v1204 = vld [vmem:[%s5 + $0x324] sm:$0xff]
  %v1205 = vld [vmem:[%s5 + $0x32c] sm:$0xf]
  %v1206 = vld [vmem:[%s6] sm:$0x7]
  %v1208 = vlaneseq
  %v1209 = vshrl.u32 %v1208, 7
  %v1210 = vsub.s32 0, %v1209
  %v1211 = vrot.slane %v1206, %v1210
  %v1212 = vlaneseq
  %v1213 = vshrl.u32 %v1212, 7
  %v1214 = vsub.s32 1, %v1213
  %v1215 = vrot.slane %v1206, %v1214
  %v1216 = vlaneseq
  %v1217 = vshrl.u32 %v1216, 7
  %v1218 = vsub.s32 2, %v1217
  %v1219 = vrot.slane %v1206, %v1218
  %v1359 = vunpack.c.l.b16 %v1070
  %v1360 = vunpack.c.h.b16 %v1070
  %v1361 = vunpack.c.l.b16 %v1071
  %v1362 = vunpack.c.l.b16 %v1072
  %v1363 = vunpack.c.h.b16 %v1072
  %v1364 = vunpack.c.l.b16 %v1073
  %v1365 = vunpack.c.l.b16 %v1074
  %v1366 = vunpack.c.h.b16 %v1074
  %v1367 = vunpack.c.l.b16 %v1075
  %v1368 = vunpack.c.l.b16 %v1076
  %v1369 = vunpack.c.h.b16 %v1076
  %v1370 = vunpack.c.l.b16 %v1077
  %v1371 = vunpack.c.l.b16 %v1078
  %v1372 = vunpack.c.h.b16 %v1078
  %v1373 = vunpack.c.l.b16 %v1079
  %v1374 = vunpack.c.l.b16 %v1080
  %v1375 = vunpack.c.h.b16 %v1080
  %v1376 = vunpack.c.l.b16 %v1081
  %v1377 = vunpack.c.l.b16 %v1082
  %v1378 = vunpack.c.h.b16 %v1082
  %v1379 = vunpack.c.l.b16 %v1083
  %v1380 = vunpack.c.l.b16 %v1084
  %v1381 = vunpack.c.h.b16 %v1084
  %v1382 = vunpack.c.l.b16 %v1085
  %v1383 = vunpack.c.l.b16 %v1086
  %v1384 = vunpack.c.h.b16 %v1086
  %v1385 = vunpack.c.l.b16 %v1087
  %v1386 = vunpack.c.l.b16 %v1088
  %v1387 = vunpack.c.h.b16 %v1088
  %v1388 = vunpack.c.l.b16 %v1089
  %v1389 = vunpack.c.l.b16 %v1090
  %v1390 = vunpack.c.h.b16 %v1090
  %v1391 = vunpack.c.l.b16 %v1091
  %v1392 = vunpack.c.l.b16 %v1092
  %v1393 = vunpack.c.h.b16 %v1092
  %v1394 = vunpack.c.l.b16 %v1093
  %v1395 = vunpack.c.l.b16 %v1094
  %v1396 = vunpack.c.h.b16 %v1094
  %v1397 = vunpack.c.l.b16 %v1095
  %v1398 = vunpack.c.l.b16 %v1096
  %v1399 = vunpack.c.h.b16 %v1096
  %v1400 = vunpack.c.l.b16 %v1097
  %v1401 = vunpack.c.l.b16 %v1098
  %v1402 = vunpack.c.h.b16 %v1098
  %v1403 = vunpack.c.l.b16 %v1099
  %v1404 = vunpack.c.l.b16 %v1100
  %v1405 = vunpack.c.h.b16 %v1100
  %v1406 = vunpack.c.l.b16 %v1101
  %v1407 = vunpack.c.l.b16 %v1102
  %v1408 = vunpack.c.h.b16 %v1102
  %v1409 = vunpack.c.l.b16 %v1103
  %v1410 = vunpack.c.l.b16 %v1104
  %v1411 = vunpack.c.h.b16 %v1104
  %v1412 = vunpack.c.l.b16 %v1105
  %v1413 = vunpack.c.l.b16 %v1106
  %v1414 = vunpack.c.h.b16 %v1106
  %v1415 = vunpack.c.l.b16 %v1107
  %v1416 = vunpack.c.l.b16 %v1108
  %v1417 = vunpack.c.h.b16 %v1108
  %v1418 = vunpack.c.l.b16 %v1109
  %v1419 = vunpack.c.l.b16 %v1110
  %v1420 = vunpack.c.h.b16 %v1110
  %v1421 = vunpack.c.l.b16 %v1111
  %v1422 = vunpack.c.l.b16 %v1112
  %v1423 = vunpack.c.h.b16 %v1112
  %v1424 = vunpack.c.l.b16 %v1113
  %v1425 = vunpack.c.l.b16 %v1114
  %v1426 = vunpack.c.h.b16 %v1114
  %v1427 = vunpack.c.l.b16 %v1115
  %v1428 = vunpack.c.l.b16 %v1116
  %v1429 = vunpack.c.h.b16 %v1116
  %v1430 = vunpack.c.l.b16 %v1117
  %v1431 = vunpack.c.l.b16 %v1118
  %v1432 = vunpack.c.h.b16 %v1118
  %v1433 = vunpack.c.l.b16 %v1119
  %v1434 = vunpack.c.l.b16 %v1120
  %v1435 = vunpack.c.h.b16 %v1120
  %v1436 = vunpack.c.l.b16 %v1121
  %v1437 = vunpack.c.l.b16 %v1122
  %v1438 = vunpack.c.h.b16 %v1122
  %v1439 = vunpack.c.l.b16 %v1123
  %v1440 = vunpack.c.l.b16 %v1124
  %v1441 = vunpack.c.h.b16 %v1124
  %v1442 = vunpack.c.l.b16 %v1125
  %v1443 = vunpack.c.l.b16 %v1126
  %v1444 = vunpack.c.h.b16 %v1126
  %v1445 = vunpack.c.l.b16 %v1127
  %v1446 = vunpack.c.l.b16 %v1128
  %v1447 = vunpack.c.h.b16 %v1128
  %v1448 = vunpack.c.l.b16 %v1129
  %v1449 = vunpack.c.l.b16 %v1130
  %v1450 = vunpack.c.h.b16 %v1130
  %v1451 = vunpack.c.l.b16 %v1131
  %v1452 = vunpack.c.l.b16 %v1132
  %v1453 = vunpack.c.h.b16 %v1132
  %v1454 = vunpack.c.l.b16 %v1133
  %v1455 = vunpack.c.l.b16 %v1134
  %v1456 = vunpack.c.h.b16 %v1134
  %v1457 = vunpack.c.l.b16 %v1135
  %v1458 = vunpack.c.l.b16 %v1136
  %v1459 = vunpack.c.h.b16 %v1136
  %v1460 = vunpack.c.l.b16 %v1137
  %v1461 = vunpack.c.l.b16 %v1138
  %v1462 = vunpack.c.h.b16 %v1138
  %v1463 = vunpack.c.l.b16 %v1139
  %v1464 = vunpack.c.l.b16 %v1140
  %v1465 = vunpack.c.h.b16 %v1140
  %v1466 = vunpack.c.l.b16 %v1141
  %v1467 = vunpack.c.l.b16 %v1142
  %v1468 = vunpack.c.h.b16 %v1142
  %v1469 = vunpack.c.l.b16 %v1143
  %v1470 = vunpack.c.l.b16 %v1144
  %v1471 = vunpack.c.h.b16 %v1144
  %v1472 = vunpack.c.l.b16 %v1145
  %v1473 = vunpack.c.l.b16 %v1146
  %v1474 = vunpack.c.h.b16 %v1146
  %v1475 = vunpack.c.l.b16 %v1147
  %v1476 = vunpack.c.l.b16 %v1148
  %v1477 = vunpack.c.h.b16 %v1148
  %v1478 = vunpack.c.l.b16 %v1149
  %v1479 = vunpack.c.l.b16 %v1150
  %v1480 = vunpack.c.h.b16 %v1150
  %v1481 = vunpack.c.l.b16 %v1151
  %v1482 = vunpack.c.l.b16 %v1152
  %v1483 = vunpack.c.h.b16 %v1152
  %v1484 = vunpack.c.l.b16 %v1153
  %v1485 = vunpack.c.l.b16 %v1154
  %v1486 = vunpack.c.h.b16 %v1154
  %v1487 = vunpack.c.l.b16 %v1155
  %v1488 = vunpack.c.l.b16 %v1156
  %v1489 = vunpack.c.h.b16 %v1156
  %v1490 = vunpack.c.l.b16 %v1157
  %v1491 = vunpack.c.l.b16 %v1158
  %v1492 = vunpack.c.h.b16 %v1158
  %v1493 = vunpack.c.l.b16 %v1159
  %v1494 = vunpack.c.l.b16 %v1160
  %v1495 = vunpack.c.h.b16 %v1160
  %v1496 = vunpack.c.l.b16 %v1161
  %v1497 = vunpack.c.l.b16 %v1162
  %v1498 = vunpack.c.h.b16 %v1162
  %v1499 = vunpack.c.l.b16 %v1163
  %v1500 = vunpack.c.l.b16 %v1164
  %v1501 = vunpack.c.h.b16 %v1164
  %v1502 = vunpack.c.l.b16 %v1165
  %v1503 = vunpack.c.l.b16 %v1166
  %v1504 = vunpack.c.h.b16 %v1166
  %v1505 = vunpack.c.l.b16 %v1167
  %v1506 = vunpack.c.l.b16 %v1168
  %v1507 = vunpack.c.h.b16 %v1168
  %v1508 = vunpack.c.l.b16 %v1169
  %v1509 = vunpack.c.l.b16 %v1170
  %v1510 = vunpack.c.h.b16 %v1170
  %v1511 = vunpack.c.l.b16 %v1171
  %v1512 = vunpack.c.l.b16 %v1172
  %v1513 = vunpack.c.h.b16 %v1172
  %v1514 = vunpack.c.l.b16 %v1173
  %v1515 = vunpack.c.l.b16 %v1174
  %v1516 = vunpack.c.h.b16 %v1174
  %v1517 = vunpack.c.l.b16 %v1175
  %v1518 = vunpack.c.l.b16 %v1176
  %v1519 = vunpack.c.h.b16 %v1176
  %v1520 = vunpack.c.l.b16 %v1177
  %v1521 = vunpack.c.l.b16 %v1178
  %v1522 = vunpack.c.h.b16 %v1178
  %v1523 = vunpack.c.l.b16 %v1179
  %v1524 = vunpack.c.l.b16 %v1180
  %v1525 = vunpack.c.h.b16 %v1180
  %v1526 = vunpack.c.l.b16 %v1181
  %v1527 = vunpack.c.l.b16 %v1182
  %v1528 = vunpack.c.h.b16 %v1182
  %v1529 = vunpack.c.l.b16 %v1183
  %v1530 = vunpack.c.l.b16 %v1184
  %v1531 = vunpack.c.h.b16 %v1184
  %v1532 = vunpack.c.l.b16 %v1185
  %v1533 = vunpack.c.l.b16 %v1186
  %v1534 = vunpack.c.h.b16 %v1186
  %v1535 = vunpack.c.l.b16 %v1187
  %v1536 = vunpack.c.l.b16 %v1188
  %v1537 = vunpack.c.h.b16 %v1188
  %v1538 = vunpack.c.l.b16 %v1189
  %v1539 = vunpack.c.l.b16 %v1190
  %v1540 = vunpack.c.h.b16 %v1190
  %v1541 = vunpack.c.l.b16 %v1191
  %v1542 = vunpack.c.l.b16 %v1192
  %v1543 = vunpack.c.h.b16 %v1192
  %v1544 = vunpack.c.l.b16 %v1193
  %v1545 = vunpack.c.l.b16 %v1194
  %v1546 = vunpack.c.h.b16 %v1194
  %v1547 = vunpack.c.l.b16 %v1195
  %v1548 = vunpack.c.l.b16 %v1196
  %v1549 = vunpack.c.h.b16 %v1196
  %v1550 = vunpack.c.l.b16 %v1197
  %v1551 = vunpack.c.l.b16 %v1198
  %v1552 = vunpack.c.h.b16 %v1198
  %v1553 = vunpack.c.l.b16 %v1199
  %v1554 = vunpack.c.l.b16 %v1200
  %v1555 = vunpack.c.h.b16 %v1200
  %v1556 = vunpack.c.l.b16 %v1201
  %v1557 = vunpack.c.l.b16 %v1202
  %v1558 = vunpack.c.h.b16 %v1202
  %v1559 = vunpack.c.l.b16 %v1203
  %v1560 = vunpack.c.l.b16 %v1204
  %v1561 = vunpack.c.h.b16 %v1204
  %v1562 = vunpack.c.l.b16 %v1205
  %v1563 = vpack.c.b16 %v1362, %v1359
  %v1564 = vpack.c.b16 %v1363, %v1360
  %v1565 = vpack.c.b16 %v1364, %v1361
  %v1566 = vpack.c.b16 %v1368, %v1365
  %v1567 = vpack.c.b16 %v1369, %v1366
  %v1568 = vpack.c.b16 %v1370, %v1367
  %v1569 = vpack.c.b16 %v1374, %v1371
  %v1570 = vpack.c.b16 %v1375, %v1372
  %v1571 = vpack.c.b16 %v1376, %v1373
  %v1572 = vpack.c.b16 %v1380, %v1377
  %v1573 = vpack.c.b16 %v1381, %v1378
  %v1574 = vpack.c.b16 %v1382, %v1379
  %v1575 = vpack.c.b16 %v1386, %v1383
  %v1576 = vpack.c.b16 %v1387, %v1384
  %v1577 = vpack.c.b16 %v1388, %v1385
  %v1578 = vpack.c.b16 %v1392, %v1389
  %v1579 = vpack.c.b16 %v1393, %v1390
  %v1580 = vpack.c.b16 %v1394, %v1391
  %v1581 = vpack.c.b16 %v1398, %v1395
  %v1582 = vpack.c.b16 %v1399, %v1396
  %v1583 = vpack.c.b16 %v1400, %v1397
  %v1584 = vpack.c.b16 %v1404, %v1401
  %v1585 = vpack.c.b16 %v1405, %v1402
  %v1586 = vpack.c.b16 %v1406, %v1403
  %v1587 = vpack.c.b16 %v1410, %v1407
  %v1588 = vpack.c.b16 %v1411, %v1408
  %v1589 = vpack.c.b16 %v1412, %v1409
  %v1590 = vpack.c.b16 %v1416, %v1413
  %v1591 = vpack.c.b16 %v1417, %v1414
  %v1592 = vpack.c.b16 %v1418, %v1415
  %v1593 = vpack.c.b16 %v1422, %v1419
  %v1594 = vpack.c.b16 %v1423, %v1420
  %v1595 = vpack.c.b16 %v1424, %v1421
  %v1596 = vpack.c.b16 %v1428, %v1425
  %v1597 = vpack.c.b16 %v1429, %v1426
  %v1598 = vpack.c.b16 %v1430, %v1427
  %v1599 = vpack.c.b16 %v1434, %v1431
  %v1600 = vpack.c.b16 %v1435, %v1432
  %v1601 = vpack.c.b16 %v1436, %v1433
  %v1602 = vpack.c.b16 %v1440, %v1437
  %v1603 = vpack.c.b16 %v1441, %v1438
  %v1604 = vpack.c.b16 %v1442, %v1439
  %v1605 = vpack.c.b16 %v1446, %v1443
  %v1606 = vpack.c.b16 %v1447, %v1444
  %v1607 = vpack.c.b16 %v1448, %v1445
  %v1608 = vpack.c.b16 %v1452, %v1449
  %v1609 = vpack.c.b16 %v1453, %v1450
  %v1610 = vpack.c.b16 %v1454, %v1451
  %v1611 = vpack.c.b16 %v1458, %v1455
  %v1612 = vpack.c.b16 %v1459, %v1456
  %v1613 = vpack.c.b16 %v1460, %v1457
  %v1614 = vpack.c.b16 %v1464, %v1461
  %v1615 = vpack.c.b16 %v1465, %v1462
  %v1616 = vpack.c.b16 %v1466, %v1463
  %v1617 = vpack.c.b16 %v1470, %v1467
  %v1618 = vpack.c.b16 %v1471, %v1468
  %v1619 = vpack.c.b16 %v1472, %v1469
  %v1620 = vpack.c.b16 %v1476, %v1473
  %v1621 = vpack.c.b16 %v1477, %v1474
  %v1622 = vpack.c.b16 %v1478, %v1475
  %v1623 = vpack.c.b16 %v1482, %v1479
  %v1624 = vpack.c.b16 %v1483, %v1480
  %v1625 = vpack.c.b16 %v1484, %v1481
  %v1626 = vpack.c.b16 %v1488, %v1485
  %v1627 = vpack.c.b16 %v1489, %v1486
  %v1628 = vpack.c.b16 %v1490, %v1487
  %v1629 = vpack.c.b16 %v1494, %v1491
  %v1630 = vpack.c.b16 %v1495, %v1492
  %v1631 = vpack.c.b16 %v1496, %v1493
  %v1632 = vpack.c.b16 %v1500, %v1497
  %v1633 = vpack.c.b16 %v1501, %v1498
  %v1634 = vpack.c.b16 %v1502, %v1499
  %v1635 = vpack.c.b16 %v1506, %v1503
  %v1636 = vpack.c.b16 %v1507, %v1504
  %v1637 = vpack.c.b16 %v1508, %v1505
  %v1638 = vpack.c.b16 %v1512, %v1509
  %v1639 = vpack.c.b16 %v1513, %v1510
  %v1640 = vpack.c.b16 %v1514, %v1511
  %v1641 = vpack.c.b16 %v1518, %v1515
  %v1642 = vpack.c.b16 %v1519, %v1516
  %v1643 = vpack.c.b16 %v1520, %v1517
  %v1644 = vpack.c.b16 %v1524, %v1521
  %v1645 = vpack.c.b16 %v1525, %v1522
  %v1646 = vpack.c.b16 %v1526, %v1523
  %v1647 = vpack.c.b16 %v1530, %v1527
  %v1648 = vpack.c.b16 %v1531, %v1528
  %v1649 = vpack.c.b16 %v1532, %v1529
  %v1650 = vpack.c.b16 %v1536, %v1533
  %v1651 = vpack.c.b16 %v1537, %v1534
  %v1652 = vpack.c.b16 %v1538, %v1535
  %v1653 = vpack.c.b16 %v1542, %v1539
  %v1654 = vpack.c.b16 %v1543, %v1540
  %v1655 = vpack.c.b16 %v1544, %v1541
  %v1656 = vpack.c.b16 %v1548, %v1545
  %v1657 = vpack.c.b16 %v1549, %v1546
  %v1658 = vpack.c.b16 %v1550, %v1547
  %v1659 = vpack.c.b16 %v1554, %v1551
  %v1660 = vpack.c.b16 %v1555, %v1552
  %v1661 = vpack.c.b16 %v1556, %v1553
  %v1662 = vpack.c.b16 %v1560, %v1557
  %v1663 = vpack.c.b16 %v1561, %v1558
  %v1664 = vpack.c.b16 %v1562, %v1559
  %vm1767 = vcmask 261120
  %v1769 = vsel %vm1767, %v1069, 0
  %1771 = vmatprep.subr.bf16.mxu0 %v1564
  %1772 = vmatpush1.bf16.msra.mxu0 %v1563
  %1773 = vmatprep.subr.bf16.mxu0 %v1567
  %1774 = vmatpush1.bf16.msra.mxu0 %v1566
  %1775 = vmatprep.subr.bf16.mxu0 %v1570
  %1776 = vmatpush1.bf16.msra.mxu0 %v1569
  %1777 = vmatprep.subr.bf16.mxu0 %v1573
  %1778 = vmatpush1.bf16.msra.mxu0 %v1572
  %1779 = vmatprep.subr.bf16.mxu0 %v1576
  %1780 = vmatpush1.bf16.msra.mxu0 %v1575
  %1781 = vmatprep.subr.bf16.mxu0 %v1579
  %1782 = vmatpush1.bf16.msra.mxu0 %v1578
  %1783 = vmatprep.subr.bf16.mxu0 %v1582
  %1784 = vmatpush1.bf16.msra.mxu0 %v1581
  %1785 = vmatprep.subr.bf16.mxu0 %v1585
  %1786 = vmatpush1.bf16.msra.mxu0 %v1584
  %1787 = vmatprep.subr.bf16.mxu0 %v1588
  %1788 = vmatpush1.bf16.msra.mxu0 %v1587
  %1789 = vmatprep.subr.bf16.mxu0 %v1591
  %1790 = vmatpush1.bf16.msra.mxu0 %v1590
  %1791 = vmatprep.subr.bf16.mxu0 %v1594
  %1792 = vmatpush1.bf16.msra.mxu0 %v1593
  %1793 = vmatprep.subr.bf16.mxu0 %v1597
  %1794 = vmatpush1.bf16.msra.mxu0 %v1596
  %1795 = vmatprep.subr.bf16.mxu0 %v1600
  %1796 = vmatpush1.bf16.msra.mxu0 %v1599
  %1797 = vmatprep.subr.bf16.mxu0 %v1603
  %1798 = vmatpush1.bf16.msra.mxu0 %v1602
  %1799 = vmatprep.subr.bf16.mxu0 %v1606
  %1800 = vmatpush1.bf16.msra.mxu0 %v1605
  %1801 = vmatprep.subr.bf16.mxu0 %v1609
  %1802 = vmatpush1.bf16.msra.mxu0 %v1608
  %1803 = vmatprep.mubr.bf16.mxu0 %v1066
  %1804 = vmatmul.mubr.bf16.gmra.mrb[0].mxu0 %v1065
  %v1805 = vpop.f32.mrb[0].mxu0
  %v1806 = vadd.f32 %v1211, %v1805
  %v1807 = vpop.f32.mrb[0].mxu0
  %v1808 = vadd.f32 %v1215, %v1807
  %v1809 = vpop.f32.mrb[0].mxu0
  %v1810 = vadd.f32 %v1211, %v1809
  %v1811 = vpop.f32.mrb[0].mxu0
  %v1812 = vadd.f32 %v1215, %v1811
  %1813 = vdwg.mxu0
  %1814 = vmatprep.subr.bf16.mxu0 %v1612
  %1815 = vmatpush1.bf16.msra.mxu0 %v1611
  %1816 = vmatprep.subr.bf16.mxu0 %v1615
  %1817 = vmatpush1.bf16.msra.mxu0 %v1614
  %1818 = vmatprep.subr.bf16.mxu0 %v1618
  %1819 = vmatpush1.bf16.msra.mxu0 %v1617
  %1820 = vmatprep.subr.bf16.mxu0 %v1621
  %1821 = vmatpush1.bf16.msra.mxu0 %v1620
  %1822 = vmatprep.subr.bf16.mxu0 %v1624
  %1823 = vmatpush1.bf16.msra.mxu0 %v1623
  %1824 = vmatprep.subr.bf16.mxu0 %v1627
  %1825 = vmatpush1.bf16.msra.mxu0 %v1626
  %1826 = vmatprep.subr.bf16.mxu0 %v1630
  %1827 = vmatpush1.bf16.msra.mxu0 %v1629
  %1828 = vmatprep.subr.bf16.mxu0 %v1633
  %1829 = vmatpush1.bf16.msra.mxu0 %v1632
  %1830 = vmatprep.subr.bf16.mxu0 %v1636
  %1831 = vmatpush1.bf16.msra.mxu0 %v1635
  %1832 = vmatprep.subr.bf16.mxu0 %v1639
  %1833 = vmatpush1.bf16.msra.mxu0 %v1638
  %1834 = vmatprep.subr.bf16.mxu0 %v1642
  %1835 = vmatpush1.bf16.msra.mxu0 %v1641
  %1836 = vmatprep.subr.bf16.mxu0 %v1645
  %1837 = vmatpush1.bf16.msra.mxu0 %v1644
  %1838 = vmatprep.subr.bf16.mxu0 %v1648
  %1839 = vmatpush1.bf16.msra.mxu0 %v1647
  %1840 = vmatprep.subr.bf16.mxu0 %v1651
  %1841 = vmatpush1.bf16.msra.mxu0 %v1650
  %1842 = vmatprep.subr.bf16.mxu0 %v1654
  %1843 = vmatpush1.bf16.msra.mxu0 %v1653
  %1844 = vmatprep.subr.bf16.mxu0 %v1657
  %1845 = vmatpush1.bf16.msra.mxu0 %v1656
  %1846 = vmatprep.mubr.bf16.mxu0 %v1068
  %1847 = vmatmul.mubr.bf16.gmra.mrb[0].mxu0 %v1067
  %v1848 = vpop.f32.mrb[0].mxu0
  %v1849 = vadd.f32 %v1806, %v1848
  %v1850 = vpop.f32.mrb[0].mxu0
  %v1851 = vadd.f32 %v1808, %v1850
  %v1852 = vpop.f32.mrb[0].mxu0
  %v1853 = vadd.f32 %v1810, %v1852
  %v1854 = vpop.f32.mrb[0].mxu0
  %v1855 = vadd.f32 %v1812, %v1854
  %1856 = vdwg.mxu0
  %1857 = vmatprep.subr.bf16.mxu0 %v1660
  %1858 = vmatpush1.bf16.msra.mxu0 %v1659
  %1859 = vmatprep.subr.bf16.mxu0 %v1663
  %1860 = vmatpush1.bf16.msra.mxu0 %v1662
  %1861 = vmatprep.subr.bf16.mxu0 0
  %1862 = vmatpush1.bf16.msra.mxu0 0
  %1863 = vmatprep.subr.bf16.mxu0 0
  %1864 = vmatpush1.bf16.msra.mxu0 0
  %1865 = vmatprep.subr.bf16.mxu0 0
  %1866 = vmatpush1.bf16.msra.mxu0 0
  %1867 = vmatprep.subr.bf16.mxu0 0
  %1868 = vmatpush1.bf16.msra.mxu0 0
  %1869 = vmatprep.subr.bf16.mxu0 0
  %1870 = vmatpush1.bf16.msra.mxu0 0
  %1871 = vmatprep.subr.bf16.mxu0 0
  %1872 = vmatpush1.bf16.msra.mxu0 0
  %1873 = vmatprep.subr.bf16.mxu0 0
  %1874 = vmatpush1.bf16.msra.mxu0 0
  %1875 = vmatprep.subr.bf16.mxu0 0
  %1876 = vmatpush1.bf16.msra.mxu0 0
  %1877 = vmatprep.subr.bf16.mxu0 0
  %1878 = vmatpush1.bf16.msra.mxu0 0
  %1879 = vmatprep.subr.bf16.mxu0 0
  %1880 = vmatpush1.bf16.msra.mxu0 0
  %1881 = vmatprep.subr.bf16.mxu0 0
  %1882 = vmatpush1.bf16.msra.mxu0 0
  %1883 = vmatprep.subr.bf16.mxu0 0
  %1884 = vmatpush1.bf16.msra.mxu0 0
  %1885 = vmatprep.subr.bf16.mxu0 0
  %1886 = vmatpush1.bf16.msra.mxu0 0
  %1887 = vmatprep.subr.bf16.mxu0 0
  %1888 = vmatpush1.bf16.msra.mxu0 0
  %1889 = vmatprep.mubr.bf16.mxu0 0
  %1890 = vmatmul.mubr.bf16.gmra.mrb[0].mxu0 %v1769
  %v1891 = vpop.f32.mrb[0].mxu0
  %v1892 = vadd.f32 %v1849, %v1891
  %v1893 = vpop.f32.mrb[0].mxu0
  %v1894 = vadd.f32 %v1851, %v1893
  %v1895 = vpop.f32.mrb[0].mxu0
  %v1896 = vadd.f32 %v1853, %v1895
  %v1897 = vpop.f32.mrb[0].mxu0
  %v1898 = vadd.f32 %v1855, %v1897
  %1899 = vdwg.mxu0
  %1900 = vmatprep.subr.bf16.mxu0 0
  %1901 = vmatpush1.bf16.msra.mxu0 %v1565
  %1902 = vmatprep.subr.bf16.mxu0 0
  %1903 = vmatpush1.bf16.msra.mxu0 %v1568
  %1904 = vmatprep.subr.bf16.mxu0 0
  %1905 = vmatpush1.bf16.msra.mxu0 %v1571
  %1906 = vmatprep.subr.bf16.mxu0 0
  %1907 = vmatpush1.bf16.msra.mxu0 %v1574
  %1908 = vmatprep.subr.bf16.mxu0 0
  %1909 = vmatpush1.bf16.msra.mxu0 %v1577
  %1910 = vmatprep.subr.bf16.mxu0 0
  %1911 = vmatpush1.bf16.msra.mxu0 %v1580
  %1912 = vmatprep.subr.bf16.mxu0 0
  %1913 = vmatpush1.bf16.msra.mxu0 %v1583
  %1914 = vmatprep.subr.bf16.mxu0 0
  %1915 = vmatpush1.bf16.msra.mxu0 %v1586
  %1916 = vmatprep.subr.bf16.mxu0 0
  %1917 = vmatpush1.bf16.msra.mxu0 %v1589
  %1918 = vmatprep.subr.bf16.mxu0 0
  %1919 = vmatpush1.bf16.msra.mxu0 %v1592
  %1920 = vmatprep.subr.bf16.mxu0 0
  %1921 = vmatpush1.bf16.msra.mxu0 %v1595
  %1922 = vmatprep.subr.bf16.mxu0 0
  %1923 = vmatpush1.bf16.msra.mxu0 %v1598
  %1924 = vmatprep.subr.bf16.mxu0 0
  %1925 = vmatpush1.bf16.msra.mxu0 %v1601
  %1926 = vmatprep.subr.bf16.mxu0 0
  %1927 = vmatpush1.bf16.msra.mxu0 %v1604
  %1928 = vmatprep.subr.bf16.mxu0 0
  %1929 = vmatpush1.bf16.msra.mxu0 %v1607
  %1930 = vmatprep.subr.bf16.mxu0 0
  %1931 = vmatpush1.bf16.msra.mxu0 %v1610
  %1932 = vmatprep.mubr.bf16.mxu0 %v1066
  %1933 = vmatmul.mubr.bf16.gmra.mrb[0].mxu0 %v1065
  %v1934 = vpop.f32.mrb[0].mxu0
  %v1935 = vadd.f32 %v1219, %v1934
  %v1936 = vpop.f32.mrb[0].mxu0
  %v1937 = vpop.f32.mrb[0].mxu0
  %v1938 = vadd.f32 %v1219, %v1937
  %v1939 = vpop.f32.mrb[0].mxu0
  %1940 = vdwg.mxu0
  %1941 = vmatprep.subr.bf16.mxu0 0
  %1942 = vmatpush1.bf16.msra.mxu0 %v1613
  %1943 = vmatprep.subr.bf16.mxu0 0
  %1944 = vmatpush1.bf16.msra.mxu0 %v1616
  %1945 = vmatprep.subr.bf16.mxu0 0
  %1946 = vmatpush1.bf16.msra.mxu0 %v1619
  %1947 = vmatprep.subr.bf16.mxu0 0
  %1948 = vmatpush1.bf16.msra.mxu0 %v1622
  %1949 = vmatprep.subr.bf16.mxu0 0
  %1950 = vmatpush1.bf16.msra.mxu0 %v1625
  %1951 = vmatprep.subr.bf16.mxu0 0
  %1952 = vmatpush1.bf16.msra.mxu0 %v1628
  %1953 = vmatprep.subr.bf16.mxu0 0
  %1954 = vmatpush1.bf16.msra.mxu0 %v1631
  %1955 = vmatprep.subr.bf16.mxu0 0
  %1956 = vmatpush1.bf16.msra.mxu0 %v1634
  %1957 = vmatprep.subr.bf16.mxu0 0
  %1958 = vmatpush1.bf16.msra.mxu0 %v1637
  %1959 = vmatprep.subr.bf16.mxu0 0
  %1960 = vmatpush1.bf16.msra.mxu0 %v1640
  %1961 = vmatprep.subr.bf16.mxu0 0
  %1962 = vmatpush1.bf16.msra.mxu0 %v1643
  %1963 = vmatprep.subr.bf16.mxu0 0
  %1964 = vmatpush1.bf16.msra.mxu0 %v1646
  %1965 = vmatprep.subr.bf16.mxu0 0
  %1966 = vmatpush1.bf16.msra.mxu0 %v1649
  %1967 = vmatprep.subr.bf16.mxu0 0
  %1968 = vmatpush1.bf16.msra.mxu0 %v1652
  %1969 = vmatprep.subr.bf16.mxu0 0
  %1970 = vmatpush1.bf16.msra.mxu0 %v1655
  %1971 = vmatprep.subr.bf16.mxu0 0
  %1972 = vmatpush1.bf16.msra.mxu0 %v1658
  %1973 = vmatprep.mubr.bf16.mxu0 %v1068
  %1974 = vmatmul.mubr.bf16.gmra.mrb[0].mxu0 %v1067
  %v1975 = vpop.f32.mrb[0].mxu0
  %v1976 = vadd.f32 %v1935, %v1975
  %v1977 = vpop.f32.mrb[0].mxu0
  %v1978 = vpop.f32.mrb[0].mxu0
  %v1979 = vadd.f32 %v1938, %v1978
  %v1980 = vpop.f32.mrb[0].mxu0
  %1981 = vdwg.mxu0
  %1982 = vmatprep.subr.bf16.mxu0 0
  %1983 = vmatpush1.bf16.msra.mxu0 %v1661
  %1984 = vmatprep.subr.bf16.mxu0 0
  %1985 = vmatpush1.bf16.msra.mxu0 %v1664
  %1986 = vmatprep.subr.bf16.mxu0 0
  %1987 = vmatpush1.bf16.msra.mxu0 0
  %1988 = vmatprep.subr.bf16.mxu0 0
  %1989 = vmatpush1.bf16.msra.mxu0 0
  %1990 = vmatprep.subr.bf16.mxu0 0
  %1991 = vmatpush1.bf16.msra.mxu0 0
  %1992 = vmatprep.subr.bf16.mxu0 0
  %1993 = vmatpush1.bf16.msra.mxu0 0
  %1994 = vmatprep.subr.bf16.mxu0 0
  %1995 = vmatpush1.bf16.msra.mxu0 0
  %1996 = vmatprep.subr.bf16.mxu0 0
  %1997 = vmatpush1.bf16.msra.mxu0 0
  %1998 = vmatprep.subr.bf16.mxu0 0
  %1999 = vmatpush1.bf16.msra.mxu0 0
  %2000 = vmatprep.subr.bf16.mxu0 0
  %2001 = vmatpush1.bf16.msra.mxu0 0
  %2002 = vmatprep.subr.bf16.mxu0 0
  %2003 = vmatpush1.bf16.msra.mxu0 0
  %2004 = vmatprep.subr.bf16.mxu0 0
  %2005 = vmatpush1.bf16.msra.mxu0 0
  %2006 = vmatprep.subr.bf16.mxu0 0
  %2007 = vmatpush1.bf16.msra.mxu0 0
  %2008 = vmatprep.subr.bf16.mxu0 0
  %2009 = vmatpush1.bf16.msra.mxu0 0
  %2010 = vmatprep.subr.bf16.mxu0 0
  %2011 = vmatpush1.bf16.msra.mxu0 0
  %2012 = vmatprep.subr.bf16.mxu0 0
  %2013 = vmatpush1.bf16.msra.mxu0 0
  %2014 = vmatprep.mubr.bf16.mxu0 0
  %2015 = vmatmul.mubr.bf16.gmra.mrb[0].mxu0 %v1769
  %v2016 = vpop.f32.mrb[0].mxu0
  %v2017 = vadd.f32 %v1976, %v2016
  %v2018 = vpop.f32.mrb[0].mxu0
  %v2019 = vpop.f32.mrb[0].mxu0
  %v2020 = vadd.f32 %v1979, %v2019
  %v2021 = vpop.f32.mrb[0].mxu0
  %2022 = vdwg.mxu0
  %v2023 = vmax.f32 %v1892, 0.0
  %v2024 = vmax.f32 %v1894, 0.0
  %v2025 = vmax.f32 %v2017, 0.0
  %v2026 = vmax.f32 %v1896, 0.0
  %v2027 = vmax.f32 %v1898, 0.0
  %v2028 = vmax.f32 %v2020, 0.0
  %v2029 = vpack.c.bf16 %v2026, %v2023
  %v2030 = vpack.c.bf16 %v2027, %v2024
  %v2031 = vpack.c.bf16 %v2028, %v2025
  %v2032 = vld [vmem:[%s7] sm:$0xff]
  %v2033 = vld [vmem:[%s7 + $0x8] sm:$0xff]
  %v2034 = vld [vmem:[%s7 + $0x10] sm:$0xff]
  %v2035 = vld [vmem:[%s7 + $0x18] sm:$0xff]
  %v2036 = vld [vmem:[%s7 + $0x20] sm:$0xff]
  %v2037 = vld [vmem:[%s7 + $0x28] sm:$0xff]
  %v2038 = vld [vmem:[%s7 + $0x30] sm:$0xff]
  %v2039 = vld [vmem:[%s7 + $0x38] sm:$0xff]
  %v2040 = vld [vmem:[%s7 + $0x40] sm:$0xff]
  %v2041 = vld [vmem:[%s7 + $0x48] sm:$0xff]
  %v2042 = vld [vmem:[%s7 + $0x50] sm:$0xff]
  %v2043 = vld [vmem:[%s7 + $0x58] sm:$0xff]
  %v2044 = vld [vmem:[%s7 + $0x60] sm:$0xff]
  %v2045 = vld [vmem:[%s7 + $0x68] sm:$0xff]
  %v2046 = vld [vmem:[%s7 + $0x70] sm:$0xff]
  %v2047 = vld [vmem:[%s7 + $0x78] sm:$0xff]
  %v2048 = vld [vmem:[%s7 + $0x80] sm:$0xff]
  %v2049 = vld [vmem:[%s7 + $0x88] sm:$0xff]
  %v2050 = vld [vmem:[%s7 + $0x90] sm:$0xff]
  %v2051 = vld [vmem:[%s7 + $0x98] sm:$0xff]
  %v2052 = vld [vmem:[%s7 + $0xa0] sm:$0xff]
  %v2053 = vld [vmem:[%s7 + $0xa8] sm:$0xff]
  %v2054 = vld [vmem:[%s7 + $0xb0] sm:$0xff]
  %v2055 = vld [vmem:[%s7 + $0xb8] sm:$0xff]
  %v2056 = vld [vmem:[%s7 + $0xc0] sm:$0xff]
  %v2057 = vld [vmem:[%s7 + $0xc8] sm:$0xff]
  %v2058 = vld [vmem:[%s7 + $0xd0] sm:$0xff]
  %v2059 = vld [vmem:[%s7 + $0xd8] sm:$0xff]
  %v2060 = vld [vmem:[%s7 + $0xe0] sm:$0xff]
  %v2061 = vld [vmem:[%s7 + $0xe8] sm:$0xff]
  %v2062 = vld [vmem:[%s7 + $0xf0] sm:$0xff]
  %v2063 = vld [vmem:[%s7 + $0xf8] sm:$0xff]
  %v2064 = vld [vmem:[%s7 + $0x100] sm:$0xff]
  %v2065 = vld [vmem:[%s7 + $0x108] sm:$0xff]
  %v2066 = vld [vmem:[%s8] sm:$0x3]
  %v2068 = vlaneseq
  %v2069 = vshrl.u32 %v2068, 7
  %v2070 = vsub.s32 0, %v2069
  %v2071 = vrot.slane %v2066, %v2070
  %v2072 = vlaneseq
  %v2073 = vshrl.u32 %v2072, 7
  %v2074 = vsub.s32 1, %v2073
  %v2075 = vrot.slane %v2066, %v2074
  %v2112 = vunpack.c.l.b16 %v2032
  %v2113 = vunpack.c.h.b16 %v2032
  %v2114 = vunpack.c.l.b16 %v2033
  %v2115 = vunpack.c.h.b16 %v2033
  %v2116 = vunpack.c.l.b16 %v2034
  %v2117 = vunpack.c.h.b16 %v2034
  %v2118 = vunpack.c.l.b16 %v2035
  %v2119 = vunpack.c.h.b16 %v2035
  %v2120 = vunpack.c.l.b16 %v2036
  %v2121 = vunpack.c.h.b16 %v2036
  %v2122 = vunpack.c.l.b16 %v2037
  %v2123 = vunpack.c.h.b16 %v2037
  %v2124 = vunpack.c.l.b16 %v2038
  %v2125 = vunpack.c.h.b16 %v2038
  %v2126 = vunpack.c.l.b16 %v2039
  %v2127 = vunpack.c.h.b16 %v2039
  %v2128 = vunpack.c.l.b16 %v2040
  %v2129 = vunpack.c.h.b16 %v2040
  %v2130 = vunpack.c.l.b16 %v2041
  %v2131 = vunpack.c.h.b16 %v2041
  %v2132 = vunpack.c.l.b16 %v2042
  %v2133 = vunpack.c.h.b16 %v2042
  %v2134 = vunpack.c.l.b16 %v2043
  %v2135 = vunpack.c.h.b16 %v2043
  %v2136 = vunpack.c.l.b16 %v2044
  %v2137 = vunpack.c.h.b16 %v2044
  %v2138 = vunpack.c.l.b16 %v2045
  %v2139 = vunpack.c.h.b16 %v2045
  %v2140 = vunpack.c.l.b16 %v2046
  %v2141 = vunpack.c.h.b16 %v2046
  %v2142 = vunpack.c.l.b16 %v2047
  %v2143 = vunpack.c.h.b16 %v2047
  %v2144 = vunpack.c.l.b16 %v2048
  %v2145 = vunpack.c.h.b16 %v2048
  %v2146 = vunpack.c.l.b16 %v2049
  %v2147 = vunpack.c.h.b16 %v2049
  %v2148 = vunpack.c.l.b16 %v2050
  %v2149 = vunpack.c.h.b16 %v2050
  %v2150 = vunpack.c.l.b16 %v2051
  %v2151 = vunpack.c.h.b16 %v2051
  %v2152 = vunpack.c.l.b16 %v2052
  %v2153 = vunpack.c.h.b16 %v2052
  %v2154 = vunpack.c.l.b16 %v2053
  %v2155 = vunpack.c.h.b16 %v2053
  %v2156 = vunpack.c.l.b16 %v2054
  %v2157 = vunpack.c.h.b16 %v2054
  %v2158 = vunpack.c.l.b16 %v2055
  %v2159 = vunpack.c.h.b16 %v2055
  %v2160 = vunpack.c.l.b16 %v2056
  %v2161 = vunpack.c.h.b16 %v2056
  %v2162 = vunpack.c.l.b16 %v2057
  %v2163 = vunpack.c.h.b16 %v2057
  %v2164 = vunpack.c.l.b16 %v2058
  %v2165 = vunpack.c.h.b16 %v2058
  %v2166 = vunpack.c.l.b16 %v2059
  %v2167 = vunpack.c.h.b16 %v2059
  %v2168 = vunpack.c.l.b16 %v2060
  %v2169 = vunpack.c.h.b16 %v2060
  %v2170 = vunpack.c.l.b16 %v2061
  %v2171 = vunpack.c.h.b16 %v2061
  %v2172 = vunpack.c.l.b16 %v2062
  %v2173 = vunpack.c.h.b16 %v2062
  %v2174 = vunpack.c.l.b16 %v2063
  %v2175 = vunpack.c.h.b16 %v2063
  %v2176 = vunpack.c.l.b16 %v2064
  %v2177 = vunpack.c.h.b16 %v2064
  %v2178 = vunpack.c.l.b16 %v2065
  %v2179 = vunpack.c.h.b16 %v2065
  %v2180 = vpack.c.b16 %v2114, %v2112
  %v2181 = vpack.c.b16 %v2115, %v2113
  %v2182 = vpack.c.b16 %v2118, %v2116
  %v2183 = vpack.c.b16 %v2119, %v2117
  %v2184 = vpack.c.b16 %v2122, %v2120
  %v2185 = vpack.c.b16 %v2123, %v2121
  %v2186 = vpack.c.b16 %v2126, %v2124
  %v2187 = vpack.c.b16 %v2127, %v2125
  %v2188 = vpack.c.b16 %v2130, %v2128
  %v2189 = vpack.c.b16 %v2131, %v2129
  %v2190 = vpack.c.b16 %v2134, %v2132
  %v2191 = vpack.c.b16 %v2135, %v2133
  %v2192 = vpack.c.b16 %v2138, %v2136
  %v2193 = vpack.c.b16 %v2139, %v2137
  %v2194 = vpack.c.b16 %v2142, %v2140
  %v2195 = vpack.c.b16 %v2143, %v2141
  %v2196 = vpack.c.b16 %v2146, %v2144
  %v2197 = vpack.c.b16 %v2147, %v2145
  %v2198 = vpack.c.b16 %v2150, %v2148
  %v2199 = vpack.c.b16 %v2151, %v2149
  %v2200 = vpack.c.b16 %v2154, %v2152
  %v2201 = vpack.c.b16 %v2155, %v2153
  %v2202 = vpack.c.b16 %v2158, %v2156
  %v2203 = vpack.c.b16 %v2159, %v2157
  %v2204 = vpack.c.b16 %v2162, %v2160
  %v2205 = vpack.c.b16 %v2163, %v2161
  %v2206 = vpack.c.b16 %v2166, %v2164
  %v2207 = vpack.c.b16 %v2167, %v2165
  %v2208 = vpack.c.b16 %v2170, %v2168
  %v2209 = vpack.c.b16 %v2171, %v2169
  %v2210 = vpack.c.b16 %v2174, %v2172
  %v2211 = vpack.c.b16 %v2175, %v2173
  %v2212 = vpack.c.b16 %v2178, %v2176
  %v2213 = vpack.c.b16 %v2179, %v2177
  %v2249 = vsel %vm797, %v2031, 0
  %2251 = vmatprep.subr.bf16.mxu0 %v2181
  %2252 = vmatpush1.bf16.msra.mxu0 %v2180
  %2253 = vmatprep.subr.bf16.mxu0 %v2183
  %2254 = vmatpush1.bf16.msra.mxu0 %v2182
  %2255 = vmatprep.subr.bf16.mxu0 %v2185
  %2256 = vmatpush1.bf16.msra.mxu0 %v2184
  %2257 = vmatprep.subr.bf16.mxu0 %v2187
  %2258 = vmatpush1.bf16.msra.mxu0 %v2186
  %2259 = vmatprep.subr.bf16.mxu0 %v2189
  %2260 = vmatpush1.bf16.msra.mxu0 %v2188
  %2261 = vmatprep.subr.bf16.mxu0 %v2191
  %2262 = vmatpush1.bf16.msra.mxu0 %v2190
  %2263 = vmatprep.subr.bf16.mxu0 %v2193
  %2264 = vmatpush1.bf16.msra.mxu0 %v2192
  %2265 = vmatprep.subr.bf16.mxu0 %v2195
  %2266 = vmatpush1.bf16.msra.mxu0 %v2194
  %2267 = vmatprep.subr.bf16.mxu0 %v2197
  %2268 = vmatpush1.bf16.msra.mxu0 %v2196
  %2269 = vmatprep.subr.bf16.mxu0 %v2199
  %2270 = vmatpush1.bf16.msra.mxu0 %v2198
  %2271 = vmatprep.subr.bf16.mxu0 %v2201
  %2272 = vmatpush1.bf16.msra.mxu0 %v2200
  %2273 = vmatprep.subr.bf16.mxu0 %v2203
  %2274 = vmatpush1.bf16.msra.mxu0 %v2202
  %2275 = vmatprep.subr.bf16.mxu0 %v2205
  %2276 = vmatpush1.bf16.msra.mxu0 %v2204
  %2277 = vmatprep.subr.bf16.mxu0 %v2207
  %2278 = vmatpush1.bf16.msra.mxu0 %v2206
  %2279 = vmatprep.subr.bf16.mxu0 %v2209
  %2280 = vmatpush1.bf16.msra.mxu0 %v2208
  %2281 = vmatprep.subr.bf16.mxu0 %v2211
  %2282 = vmatpush1.bf16.msra.mxu0 %v2210
  %2283 = vmatprep.mubr.bf16.mxu0 %v2030
  %2284 = vmatmul.mubr.bf16.gmra.mrb[0].mxu0 %v2029
  %v2285 = vpop.f32.mrb[0].mxu0
  %v2286 = vadd.f32 %v2071, %v2285
  %v2287 = vpop.f32.mrb[0].mxu0
  %v2288 = vadd.f32 %v2075, %v2287
  %v2289 = vpop.f32.mrb[0].mxu0
  %v2290 = vadd.f32 %v2071, %v2289
  %v2291 = vpop.f32.mrb[0].mxu0
  %v2292 = vadd.f32 %v2075, %v2291
  %2293 = vdwg.mxu0
  %2294 = vmatprep.subr.bf16.mxu0 %v2213
  %2295 = vmatpush1.bf16.msra.mxu0 %v2212
  %2296 = vmatprep.subr.bf16.mxu0 0
  %2297 = vmatpush1.bf16.msra.mxu0 0
  %2298 = vmatprep.subr.bf16.mxu0 0
  %2299 = vmatpush1.bf16.msra.mxu0 0
  %2300 = vmatprep.subr.bf16.mxu0 0
  %2301 = vmatpush1.bf16.msra.mxu0 0
  %2302 = vmatprep.subr.bf16.mxu0 0
  %2303 = vmatpush1.bf16.msra.mxu0 0
  %2304 = vmatprep.subr.bf16.mxu0 0
  %2305 = vmatpush1.bf16.msra.mxu0 0
  %2306 = vmatprep.subr.bf16.mxu0 0
  %2307 = vmatpush1.bf16.msra.mxu0 0
  %2308 = vmatprep.subr.bf16.mxu0 0
  %2309 = vmatpush1.bf16.msra.mxu0 0
  %2310 = vmatprep.subr.bf16.mxu0 0
  %2311 = vmatpush1.bf16.msra.mxu0 0
  %2312 = vmatprep.subr.bf16.mxu0 0
  %2313 = vmatpush1.bf16.msra.mxu0 0
  %2314 = vmatprep.subr.bf16.mxu0 0
  %2315 = vmatpush1.bf16.msra.mxu0 0
  %2316 = vmatprep.subr.bf16.mxu0 0
  %2317 = vmatpush1.bf16.msra.mxu0 0
  %2318 = vmatprep.subr.bf16.mxu0 0
  %2319 = vmatpush1.bf16.msra.mxu0 0
  %2320 = vmatprep.subr.bf16.mxu0 0
  %2321 = vmatpush1.bf16.msra.mxu0 0
  %2322 = vmatprep.subr.bf16.mxu0 0
  %2323 = vmatpush1.bf16.msra.mxu0 0
  %2324 = vmatprep.subr.bf16.mxu0 0
  %2325 = vmatpush1.bf16.msra.mxu0 0
  %2326 = vmatprep.mubr.bf16.mxu0 0
  %2327 = vmatmul.mubr.bf16.gmra.mrb[0].mxu0 %v2249
  %v2328 = vpop.f32.mrb[0].mxu0
  %v2329 = vadd.f32 %v2286, %v2328
  %v2330 = vpop.f32.mrb[0].mxu0
  %v2331 = vadd.f32 %v2288, %v2330
  %v2332 = vpop.f32.mrb[0].mxu0
  %v2333 = vadd.f32 %v2290, %v2332
  %v2334 = vpop.f32.mrb[0].mxu0
  %v2335 = vadd.f32 %v2292, %v2334
  %2336 = vdwg.mxu0
  %v2337 = vmax.f32 %v2329, 0.0
  %v2338 = vmax.f32 %v2331, 0.0
  %v2339 = vmax.f32 %v2333, 0.0
  %v2340 = vmax.f32 %v2335, 0.0
  %v2341 = vpack.c.bf16 %v2339, %v2337
  %v2342 = vpack.c.bf16 %v2340, %v2338
  %v2343 = vld [vmem:[%s9] sm:$0xf]
  %v2344 = vld [vmem:[%s9 + $0x4] sm:$0xf]
  %v2345 = vld [vmem:[%s9 + $0x8] sm:$0xf]
  %v2346 = vld [vmem:[%s9 + $0xc] sm:$0xf]
  %v2347 = vld [vmem:[%s9 + $0x10] sm:$0xf]
  %v2348 = vld [vmem:[%s9 + $0x14] sm:$0xf]
  %v2349 = vld [vmem:[%s9 + $0x18] sm:$0xf]
  %v2350 = vld [vmem:[%s9 + $0x1c] sm:$0xf]
  %v2351 = vld [vmem:[%s9 + $0x20] sm:$0xf]
  %v2352 = vld [vmem:[%s9 + $0x24] sm:$0xf]
  %v2353 = vld [vmem:[%s9 + $0x28] sm:$0xf]
  %v2354 = vld [vmem:[%s9 + $0x2c] sm:$0xf]
  %v2355 = vld [vmem:[%s9 + $0x30] sm:$0xf]
  %v2356 = vld [vmem:[%s9 + $0x34] sm:$0xf]
  %v2357 = vld [vmem:[%s9 + $0x38] sm:$0xf]
  %v2358 = vld [vmem:[%s9 + $0x3c] sm:$0xf]
  %v2359 = vld [vmem:[%s9 + $0x40] sm:$0xf]
  %v2360 = vld [vmem:[%s10] sm:$0x1]
  %v2362 = vlaneseq
  %v2363 = vshrl.u32 %v2362, 7
  %v2364 = vsub.s32 0, %v2363
  %v2365 = vrot.slane %v2360, %v2364
  %v2384 = vunpack.c.l.b16 %v2343
  %v2385 = vunpack.c.l.b16 %v2344
  %v2386 = vunpack.c.l.b16 %v2345
  %v2387 = vunpack.c.l.b16 %v2346
  %v2388 = vunpack.c.l.b16 %v2347
  %v2389 = vunpack.c.l.b16 %v2348
  %v2390 = vunpack.c.l.b16 %v2349
  %v2391 = vunpack.c.l.b16 %v2350
  %v2392 = vunpack.c.l.b16 %v2351
  %v2393 = vunpack.c.l.b16 %v2352
  %v2394 = vunpack.c.l.b16 %v2353
  %v2395 = vunpack.c.l.b16 %v2354
  %v2396 = vunpack.c.l.b16 %v2355
  %v2397 = vunpack.c.l.b16 %v2356
  %v2398 = vunpack.c.l.b16 %v2357
  %v2399 = vunpack.c.l.b16 %v2358
  %v2400 = vunpack.c.l.b16 %v2359
  %v2401 = vpack.c.b16 %v2385, %v2384
  %v2402 = vpack.c.b16 %v2387, %v2386
  %v2403 = vpack.c.b16 %v2389, %v2388
  %v2404 = vpack.c.b16 %v2391, %v2390
  %v2405 = vpack.c.b16 %v2393, %v2392
  %v2406 = vpack.c.b16 %v2395, %v2394
  %v2407 = vpack.c.b16 %v2397, %v2396
  %v2408 = vpack.c.b16 %v2399, %v2398
  %v2409 = vpack.c.b16 %v2400, %v2400
  %vm2418 = vcmask 64512
  %v2420 = vsel %vm2418, %v2342, 0
  %vm2422 = vcmask 1043456
  %v2424 = vsel %vm2422, %v2409, 0
  %2426 = vmatprep.subr.bf16.mxu0 0
  %2427 = vmatpush1.bf16.msra.mxu0 %v2401
  %2428 = vmatprep.subr.bf16.mxu0 0
  %2429 = vmatpush1.bf16.msra.mxu0 %v2402
  %2430 = vmatprep.subr.bf16.mxu0 0
  %2431 = vmatpush1.bf16.msra.mxu0 %v2403
  %2432 = vmatprep.subr.bf16.mxu0 0
  %2433 = vmatpush1.bf16.msra.mxu0 %v2404
  %2434 = vmatprep.subr.bf16.mxu0 0
  %2435 = vmatpush1.bf16.msra.mxu0 %v2405
  %2436 = vmatprep.subr.bf16.mxu0 0
  %2437 = vmatpush1.bf16.msra.mxu0 %v2406
  %2438 = vmatprep.subr.bf16.mxu0 0
  %2439 = vmatpush1.bf16.msra.mxu0 %v2407
  %2440 = vmatprep.subr.bf16.mxu0 0
  %2441 = vmatpush1.bf16.msra.mxu0 %v2408
  %2442 = vmatprep.subr.bf16.mxu0 0
  %2443 = vmatpush1.bf16.msra.mxu0 %v2424
  %2444 = vmatprep.subr.bf16.mxu0 0
  %2445 = vmatpush1.bf16.msra.mxu0 0
  %2446 = vmatprep.subr.bf16.mxu0 0
  %2447 = vmatpush1.bf16.msra.mxu0 0
  %2448 = vmatprep.subr.bf16.mxu0 0
  %2449 = vmatpush1.bf16.msra.mxu0 0
  %2450 = vmatprep.subr.bf16.mxu0 0
  %2451 = vmatpush1.bf16.msra.mxu0 0
  %2452 = vmatprep.subr.bf16.mxu0 0
  %2453 = vmatpush1.bf16.msra.mxu0 0
  %2454 = vmatprep.subr.bf16.mxu0 0
  %2455 = vmatpush1.bf16.msra.mxu0 0
  %2456 = vmatprep.subr.bf16.mxu0 0
  %2457 = vmatpush1.bf16.msra.mxu0 0
  %2458 = vmatprep.mubr.bf16.mxu0 %v2420
  %2459 = vmatmul.mubr.bf16.gmra.mrb[0].mxu0 %v2341
  %v2460 = vpop.f32.mrb[0].mxu0
  %v2461 = vadd.f32 %v2365, %v2460
  %v2462 = vpop.f32.mrb[0].mxu0
  %v2463 = vpop.f32.mrb[0].mxu0
  %v2464 = vadd.f32 %v2365, %v2463
  %v2465 = vpop.f32.mrb[0].mxu0
  %2466 = vdwg.mxu0
  %v2467 = vmax.f32 %v2461, 0.0
  %v2468 = vmax.f32 %v2464, 0.0
  %v2469 = vpack.c.bf16 %v2468, %v2467
  %v2470 = vld [vmem:[%s11] sm:$0xf]
  %v2471 = vld [vmem:[%s11 + $0x4] sm:$0xf]
  %v2472 = vld [vmem:[%s11 + $0x8] sm:$0xf]
  %v2473 = vld [vmem:[%s11 + $0xc] sm:$0xf]
  %v2474 = vld [vmem:[%s11 + $0x10] sm:$0xf]
  %v2475 = vld [vmem:[%s11 + $0x14] sm:$0xf]
  %v2476 = vld [vmem:[%s11 + $0x18] sm:$0xf]
  %v2477 = vld [vmem:[%s11 + $0x1c] sm:$0xf]
  %v2478 = vld [vmem:[%s11 + $0x20] sm:$0x3]
  %v2479 = vld [vmem:[%s12] sm:$0x1]
  %v2481 = vlaneseq
  %v2482 = vshrl.u32 %v2481, 7
  %v2483 = vsub.s32 0, %v2482
  %v2484 = vrot.slane %v2479, %v2483
  %v2495 = vunpack.c.l.b16 %v2470
  %v2496 = vunpack.c.l.b16 %v2471
  %v2497 = vunpack.c.l.b16 %v2472
  %v2498 = vunpack.c.l.b16 %v2473
  %v2499 = vunpack.c.l.b16 %v2474
  %v2500 = vunpack.c.l.b16 %v2475
  %v2501 = vunpack.c.l.b16 %v2476
  %v2502 = vunpack.c.l.b16 %v2477
  %v2503 = vunpack.c.l.b16 %v2478
  %v2504 = vpack.c.b16 %v2496, %v2495
  %v2505 = vpack.c.b16 %v2498, %v2497
  %v2506 = vpack.c.b16 %v2500, %v2499
  %v2507 = vpack.c.b16 %v2502, %v2501
  %v2508 = vpack.c.b16 %v2503, %v2503
  %vm2513 = vcmask 556032
  %v2515 = vsel %vm2513, %v2469, 0
  %vm2517 = vcmask 1041408
  %v2519 = vsel %vm2517, %v2508, 0
  %2521 = vmatprep.subr.bf16.mxu0 0
  %2522 = vmatpush1.bf16.msra.mxu0 %v2504
  %2523 = vmatprep.subr.bf16.mxu0 0
  %2524 = vmatpush1.bf16.msra.mxu0 %v2505
  %2525 = vmatprep.subr.bf16.mxu0 0
  %2526 = vmatpush1.bf16.msra.mxu0 %v2506
  %2527 = vmatprep.subr.bf16.mxu0 0
  %2528 = vmatpush1.bf16.msra.mxu0 %v2507
  %2529 = vmatprep.subr.bf16.mxu0 0
  %2530 = vmatpush1.bf16.msra.mxu0 %v2519
  %2531 = vmatprep.subr.bf16.mxu0 0
  %2532 = vmatpush1.bf16.msra.mxu0 0
  %2533 = vmatprep.subr.bf16.mxu0 0
  %2534 = vmatpush1.bf16.msra.mxu0 0
  %2535 = vmatprep.subr.bf16.mxu0 0
  %2536 = vmatpush1.bf16.msra.mxu0 0
  %2537 = vmatprep.subr.bf16.mxu0 0
  %2538 = vmatpush1.bf16.msra.mxu0 0
  %2539 = vmatprep.subr.bf16.mxu0 0
  %2540 = vmatpush1.bf16.msra.mxu0 0
  %2541 = vmatprep.subr.bf16.mxu0 0
  %2542 = vmatpush1.bf16.msra.mxu0 0
  %2543 = vmatprep.subr.bf16.mxu0 0
  %2544 = vmatpush1.bf16.msra.mxu0 0
  %2545 = vmatprep.subr.bf16.mxu0 0
  %2546 = vmatpush1.bf16.msra.mxu0 0
  %2547 = vmatprep.subr.bf16.mxu0 0
  %2548 = vmatpush1.bf16.msra.mxu0 0
  %2549 = vmatprep.subr.bf16.mxu0 0
  %2550 = vmatpush1.bf16.msra.mxu0 0
  %2551 = vmatprep.subr.bf16.mxu0 0
  %2552 = vmatpush1.bf16.msra.mxu0 0
  %2553 = vmatprep.mubr.bf16.mxu0 0
  %2554 = vmatmul.mubr.bf16.gmra.mrb[0].mxu0 %v2515
  %v2555 = vpop.f32.mrb[0].mxu0
  %v2556 = vadd.f32 %v2484, %v2555
  %v2557 = vpop.f32.mrb[0].mxu0
  %v2558 = vpop.f32.mrb[0].mxu0
  %v2559 = vadd.f32 %v2484, %v2558
  %v2560 = vpop.f32.mrb[0].mxu0
  %2561 = vdwg.mxu0
  %vm2562 = vcmask 23552
  %v2563 = vsel %vm2562, %v2556, -inf
  %2564 = vmax.xlane.f32.xlu0 %v2563
  %v2565 = vpop.xlane.xlu0 %2564
  %v2566 = vsel %vm2562, %v2559, -inf
  %2567 = vmax.xlane.f32.xlu0 %v2566
  %v2568 = vpop.xlane.xlu0 %2567
  %v2569 = vsub.f32 %v2556, %v2565
  %v2570 = vsub.f32 %v2559, %v2568
  %v2571 = vmul.f32 %v2569, 1.442695
  %v2572 = vpow.pop %v2571
  %v2573 = vmul.f32 %v2570, 1.442695
  %v2574 = vpow.pop %v2573
  %v2575 = vsel %vm2562, %v2572, 0.0
  %2576 = vadd.xlane.f32.xlu0 %v2575
  %v2577 = vpop.xlane.xlu0 %2576
  %v2578 = vsel %vm2562, %v2574, 0.0
  %2579 = vadd.xlane.f32.xlu0 %v2578
  %v2580 = vpop.xlane.xlu0 %2579
  %v2581 = vlog2.pop %v2577
  %v2582 = vmul.f32 %v2581, 0.6931472
  %v2583 = vlog2.pop %v2580
  %v2584 = vmul.f32 %v2583, 0.6931472
  %v2585 = vsub.f32 %v2569, %v2582
  %v2586 = vsub.f32 %v2570, %v2584
  %2587 = vst.msk [vmem:[%s13] sm:$0xff] %vm2562, %v2585
  %2588 = vst.msk [vmem:[%s13 + $0x8] sm:$0xff] %vm2562, %v2586
  // Predicated region
  $region54: #{tpu_custom_call.1} parent=0 // pred_check
    _
  $region55: #{tpu_custom_call.1} parent=0 // pred_check_branch
    %2590 = sbr.rel (0) target = $region57
  $region56: #{tpu_custom_call.1} parent=0 // pred_region
    _
  $region57: #{tpu_custom_call.1} parent=0 // pred_fallthru
    _
  // Predicated region
  $region58: #{tpu_custom_call.1} parent=0 // pred_check
    _
  $region59: #{tpu_custom_call.1} parent=0 // pred_check_branch
    %2592 = sbr.rel (0) target = $region61
  $region60: #{tpu_custom_call.1} parent=0 // pred_region
    _
  $region61: #{tpu_custom_call.1} parent=0 // pred_fallthru
    _

</llo_original>
